<compile_context>
chip_gen: v6e
topology: v6e:2x2x1
jax: 0.10.0
libtpu: 0.0.40
codegen_flags: <defaults>
</compile_context>

<pallas_src>
import functools

import jax
import jax.numpy as jnp
from jax.experimental import pallas as pl
from jax.experimental.pallas import tpu as pltpu

_LANE = 128      # vreg lane width (last dim)
_SUBLANE = 8     # f32 sublane width (second-to-last dim)


def _round_up(n, m):
    return ((n + m - 1) // m) * m


# ----------------------------------------------------------------------------
# Kernel
# ----------------------------------------------------------------------------
def _autoencoder_kernel(
    x_ref,
    we1_ref, we2_ref, we3_ref, wd1_ref, wd2_ref, wd3_ref,
    be1_ref, be2_ref, be3_ref, bd1_ref, bd2_ref, bd3_ref,
    out_ref,
):
    mm_dtype = we1_ref.dtype  # MXU operand dtype (bf16 by default, f32 option)

    def dense(h, w_ref, b_ref, relu):
        # bf16 (or f32) operands, f32 accumulation; bias add + activation in f32.
        y = jnp.dot(h.astype(mm_dtype), w_ref[...],
                    preferred_element_type=jnp.float32) + b_ref[...]
        return jnp.maximum(y, 0.0) if relu else y

    x = x_ref[...]

    # ---------------- encoder ----------------
    h = dense(x, we1_ref, be1_ref, relu=True)
    h = dense(h, we2_ref, be2_ref, relu=True)
    enc = dense(h, we3_ref, be3_ref, relu=False)

    # ------------- bottleneck: sigmoid --------
    # exp and the approximate reciprocal both run on the EUP slot (off the VALU).
    code = pl.reciprocal(1.0 + jnp.exp(-enc), approx=True)

    # ---------------- decoder ----------------
    h = dense(code, wd1_ref, bd1_ref, relu=True)
    h = dense(h, wd2_ref, bd2_ref, relu=True)
    out = dense(h, wd3_ref, bd3_ref, relu=False)

    out_ref[...] = out.astype(out_ref.dtype)


# ----------------------------------------------------------------------------
# One-time parameter prep: zero-pad feature dims to lane multiples, cast
# weights to the MXU operand dtype (biases stay f32).
# ----------------------------------------------------------------------------
def prepare_params(params, matmul_dtype=jnp.bfloat16):
    D, H = params["we1"].shape
    C = params["we3"].shape[1]
    Dp, Hp, Cp = (_round_up(n, _LANE) for n in (D, H, C))

    def pad_w(w, rp, cp):
        r, c = w.shape
        return jnp.pad(w, ((0, rp - r), (0, cp - c))).astype(matmul_dtype)

    def pad_b(b, cp):
        return jnp.pad(b, ((0, 0), (0, cp - b.shape[1]))).astype(jnp.float32)

    padded = dict(
        we1=pad_w(params["we1"], Dp, Hp), be1=pad_b(params["be1"], Hp),
        we2=pad_w(params["we2"], Hp, Hp), be2=pad_b(params["be2"], Hp),
        we3=pad_w(params["we3"], Hp, Cp), be3=pad_b(params["be3"], Cp),
        # wd1's padded input rows are zero, so the sigmoid(0)=0.5 padded code
        # lanes contribute exactly nothing to the decoder.
        wd1=pad_w(params["wd1"], Cp, Hp), bd1=pad_b(params["bd1"], Hp),
        wd2=pad_w(params["wd2"], Hp, Hp), bd2=pad_b(params["bd2"], Hp),
        wd3=pad_w(params["wd3"], Hp, Dp), bd3=pad_b(params["bd3"], Dp),
    )
    dims = (D, H, C, Dp, Hp, Cp)
    return padded, dims


# ----------------------------------------------------------------------------
# Wrapper
# ----------------------------------------------------------------------------
@functools.partial(jax.jit, static_argnames=("dims", "block_batch"))
def autoencoder_forward(x, padded_params, dims, block_batch=128):
    """x: (B, D) f32.  padded_params/dims: output of prepare_params."""
    D, H, C, Dp, Hp, Cp = dims
    B = x.shape[0]

    # Batch tile: multiple of the f32 sublane (8), up to `block_batch` rows.
    TB = min(block_batch, _round_up(max(B, 1), _SUBLANE))
    TB = _round_up(TB, _SUBLANE)
    Bp = _round_up(B, TB)

    x_p = jnp.pad(x.astype(jnp.float32), ((0, Bp - B), (0, Dp - D)))

    p = padded_params
    weights = (p["we1"], p["we2"], p["we3"], p["wd1"], p["wd2"], p["wd3"])
    biases = (p["be1"], p["be2"], p["be3"], p["bd1"], p["bd2"], p["bd3"])

    # Weights/biases: constant index_map -> fetched once, VMEM-resident.
    w_specs = [pl.BlockSpec(w.shape, lambda i: (0, 0)) for w in weights]
    b_specs = [pl.BlockSpec(b.shape, lambda i: (0, 0)) for b in biases]

    flops = 2 * Bp * (Dp * Hp + Hp * Hp + Hp * Cp + Cp * Hp + Hp * Hp + Hp * Dp)
    bytes_accessed = (
        Bp * Dp * 4                                            # x in
        + Bp * Dp * 4                                          # out
        + sum(int(w.size) * w.dtype.itemsize for w in weights)
        + sum(int(b.size) * 4 for b in biases)
    )
    cost = pl.CostEstimate(flops=int(flops),
                           transcendentals=int(Bp * Cp),
                           bytes_accessed=int(bytes_accessed))

    out_p = pl.pallas_call(
        _autoencoder_kernel,
        out_shape=jax.ShapeDtypeStruct((Bp, Dp), jnp.float32),
        grid=(Bp // TB,),
        in_specs=[pl.BlockSpec((TB, Dp), lambda i: (i, 0))] + w_specs + b_specs,
        out_specs=pl.BlockSpec((TB, Dp), lambda i: (i, 0)),
        compiler_params=pltpu.CompilerParams(
            dimension_semantics=("parallel",),   # megacore sharding on v7x
        ),
        cost_estimate=cost,
    )(x_p, *weights, *biases)

    return out_p[:B, :D]


# ----------------------------------------------------------------------------
# Parameter init (PyTorch nn.Linear default: U(-1/sqrt(fan_in), 1/sqrt(fan_in)))
# ----------------------------------------------------------------------------
def _init_linear(key, fan_in, fan_out):
    kw, kb = jax.random.split(key)
    bound = 1.0 / jnp.sqrt(fan_in)
    w = jax.random.uniform(kw, (fan_in, fan_out), jnp.float32, -bound, bound)
    b = jax.random.uniform(kb, (1, fan_out), jnp.float32, -bound, bound)
    return w, b


def make_params(key, train_data_vec_size, code_size, neurons_per_hidden_layer):
    D, C, H = train_data_vec_size, code_size, neurons_per_hidden_layer
    keys = jax.random.split(key, 6)
    we1, be1 = _init_linear(keys[0], D, H)
    we2, be2 = _init_linear(keys[1], H, H)
    we3, be3 = _init_linear(keys[2], H, C)
    wd1, bd1 = _init_linear(keys[3], C, H)
    wd2, bd2 = _init_linear(keys[4], H, H)
    wd3, bd3 = _init_linear(keys[5], H, D)
    return dict(
        we1=we1, be1=be1, we2=we2, be2=be2, we3=we3, be3=be3,
        wd1=wd1, bd1=bd1, wd2=wd2, bd2=bd2, wd3=wd3, bd3=bd3,
    )


# ----------------------------------------------------------------------------
# Demo / self-check
# ----------------------------------------------------------------------------
if __name__ == "__main__":
    batch = 256                     # exercises a multi-step (grid=(2,)) pipeline
    train_data_vec_size = 32        # D
    code_size = 8                   # C
    neurons_per_hidden_layer = 32   # H  (num_hidden_layers = 2)

    key = jax.random.PRNGKey(0)
    k_x, k_p = jax.random.split(key)
    x = jax.random.normal(k_x, (batch, train_data_vec_size), jnp.float32)
    params = make_params(k_p, train_data_vec_size, code_size,
                         neurons_per_hidden_layer)

    padded_params, dims = prepare_params(params, matmul_dtype=jnp.bfloat16)

    out = autoencoder_forward(x, padded_params, dims, block_batch=128)
    out = jax.block_until_ready(out)
    assert out.shape == (batch, train_data_vec_size)

    # Reference 1: mirrors the kernel's dtype strategy (bf16 MXU operands,
    # f32 accumulation, exact sigmoid) -> validates padding / tiling plumbing.
    def ref_bf16(x, p):
        def dense(h, w, b, relu):
            y = jnp.dot(h.astype(jnp.bfloat16), w.astype(jnp.bfloat16),
                        preferred_element_type=jnp.float32) + b
            return jnp.maximum(y, 0.0) if relu else y
        h = dense(x, p["we1"], p["be1"], True)
        h = dense(h, p["we2"], p["be2"], True)
        code = jax.nn.sigmoid(dense(h, p["we3"], p["be3"], False))
        h = dense(code, p["wd1"], p["bd1"], True)
        h = dense(h, p["wd2"], p["bd2"], True)
        return dense(h, p["wd3"], p["bd3"], False)

    # Reference 2: pure f32 forward (the PyTorch-faithful math).
    def ref_f32(x, p):
        h = jnp.maximum(x @ p["we1"] + p["be1"], 0.0)
        h = jnp.maximum(h @ p["we2"] + p["be2"], 0.0)
        code = jax.nn.sigmoid(h @ p["we3"] + p["be3"])
        h = jnp.maximum(code @ p["wd1"] + p["bd1"], 0.0)
        h = jnp.maximum(h @ p["wd2"] + p["bd2"], 0.0)
        return h @ p["wd3"] + p["bd3"]

    exp_bf16 = ref_bf16(x, params)
    exp_f32 = ref_f32(x, params)

    assert jnp.allclose(out, exp_bf16, atol=2e-2, rtol=2e-2), (
        "mismatch vs bf16-mirrored reference: "
        f"max abs diff {float(jnp.max(jnp.abs(out - exp_bf16)))}")
    assert jnp.allclose(out, exp_f32, atol=7e-2, rtol=7e-2), (
        "mismatch vs f32 reference: "
        f"max abs diff {float(jnp.max(jnp.abs(out - exp_f32)))}")

    print("KERNEL_OK")
</pallas_src>

<mosaic_0001>
module attributes {stable_mosaic.version = 11 : i64} {
  func.func @_autoencoder_kernel(%arg0: i32, %arg1: memref<128x128xf32, #tpu.memory_space<vmem>>, %arg2: memref<128x128xbf16, #tpu.memory_space<vmem>>, %arg3: memref<128x128xbf16, #tpu.memory_space<vmem>>, %arg4: memref<128x128xbf16, #tpu.memory_space<vmem>>, %arg5: memref<128x128xbf16, #tpu.memory_space<vmem>>, %arg6: memref<128x128xbf16, #tpu.memory_space<vmem>>, %arg7: memref<128x128xbf16, #tpu.memory_space<vmem>>, %arg8: memref<1x128xf32, #tpu.memory_space<vmem>>, %arg9: memref<1x128xf32, #tpu.memory_space<vmem>>, %arg10: memref<1x128xf32, #tpu.memory_space<vmem>>, %arg11: memref<1x128xf32, #tpu.memory_space<vmem>>, %arg12: memref<1x128xf32, #tpu.memory_space<vmem>>, %arg13: memref<1x128xf32, #tpu.memory_space<vmem>>, %arg14: memref<128x128xf32, #tpu.memory_space<vmem>>) attributes {dimension_semantics = [#tpu.dimension_semantics<parallel>], iteration_bounds = array<i64: 2>, scalar_prefetch = 0 : i64, scratch_operands = 0 : i64, tpu.core_type = #tpu.core_type<tc>, window_params = [{transform_indices = @transform_0, window_bounds = array<i64: 128, 128>}, {pipeline_mode = #tpu.pipeline_mode<synchronous>, transform_indices = @transform_1, window_bounds = array<i64: 128, 128>}, {pipeline_mode = #tpu.pipeline_mode<synchronous>, transform_indices = @transform_2, window_bounds = array<i64: 128, 128>}, {pipeline_mode = #tpu.pipeline_mode<synchronous>, transform_indices = @transform_3, window_bounds = array<i64: 128, 128>}, {pipeline_mode = #tpu.pipeline_mode<synchronous>, transform_indices = @transform_4, window_bounds = array<i64: 128, 128>}, {pipeline_mode = #tpu.pipeline_mode<synchronous>, transform_indices = @transform_5, window_bounds = array<i64: 128, 128>}, {pipeline_mode = #tpu.pipeline_mode<synchronous>, transform_indices = @transform_6, window_bounds = array<i64: 128, 128>}, {pipeline_mode = #tpu.pipeline_mode<synchronous>, transform_indices = @transform_7, window_bounds = array<i64: 1, 128>}, {pipeline_mode = #tpu.pipeline_mode<synchronous>, transform_indices = @transform_8, window_bounds = array<i64: 1, 128>}, {pipeline_mode = #tpu.pipeline_mode<synchronous>, transform_indices = @transform_9, window_bounds = array<i64: 1, 128>}, {pipeline_mode = #tpu.pipeline_mode<synchronous>, transform_indices = @transform_10, window_bounds = array<i64: 1, 128>}, {pipeline_mode = #tpu.pipeline_mode<synchronous>, transform_indices = @transform_11, window_bounds = array<i64: 1, 128>}, {pipeline_mode = #tpu.pipeline_mode<synchronous>, transform_indices = @transform_12, window_bounds = array<i64: 1, 128>}, {transform_indices = @transform_13, window_bounds = array<i64: 128, 128>}]} {
    %c0 = arith.constant 0 : index
    %c0_0 = arith.constant 0 : index
    %0 = vector.load %arg1[%c0, %c0_0] : memref<128x128xf32, #tpu.memory_space<vmem>>, vector<128x128xf32>
    %1 = arith.truncf %0 : vector<128x128xf32> to vector<128x128xbf16>
    %c0_1 = arith.constant 0 : index
    %c0_2 = arith.constant 0 : index
    %2 = vector.load %arg2[%c0_1, %c0_2] : memref<128x128xbf16, #tpu.memory_space<vmem>>, vector<128x128xbf16>
    %cst = arith.constant dense<0.000000e+00> : vector<128x128xf32>
    %3 = tpu.matmul %1, %2, %cst {dimension_numbers = #tpu.dot_dimension_numbers<[1], [0], [0], [1], [0, 0, 1, 1], [], []>} : vector<128x128xbf16>, vector<128x128xbf16>, vector<128x128xf32> -> vector<128x128xf32>
    %c0_3 = arith.constant 0 : index
    %c0_4 = arith.constant 0 : index
    %4 = vector.load %arg8[%c0_3, %c0_4] : memref<1x128xf32, #tpu.memory_space<vmem>>, vector<1x128xf32>
    %5 = vector.broadcast %4 : vector<1x128xf32> to vector<128x128xf32>
    %6 = arith.addf %3, %5 : vector<128x128xf32>
    %cst_5 = arith.constant 0.000000e+00 : f32
    %7 = vector.broadcast %cst_5 : f32 to vector<128x128xf32>
    %8 = arith.maximumf %6, %7 : vector<128x128xf32>
    %9 = arith.truncf %8 : vector<128x128xf32> to vector<128x128xbf16>
    %c0_6 = arith.constant 0 : index
    %c0_7 = arith.constant 0 : index
    %10 = vector.load %arg3[%c0_6, %c0_7] : memref<128x128xbf16, #tpu.memory_space<vmem>>, vector<128x128xbf16>
    %cst_8 = arith.constant dense<0.000000e+00> : vector<128x128xf32>
    %11 = tpu.matmul %9, %10, %cst_8 {dimension_numbers = #tpu.dot_dimension_numbers<[1], [0], [0], [1], [0, 0, 1, 1], [], []>} : vector<128x128xbf16>, vector<128x128xbf16>, vector<128x128xf32> -> vector<128x128xf32>
    %c0_9 = arith.constant 0 : index
    %c0_10 = arith.constant 0 : index
    %12 = vector.load %arg9[%c0_9, %c0_10] : memref<1x128xf32, #tpu.memory_space<vmem>>, vector<1x128xf32>
    %13 = vector.broadcast %12 : vector<1x128xf32> to vector<128x128xf32>
    %14 = arith.addf %11, %13 : vector<128x128xf32>
    %cst_11 = arith.constant 0.000000e+00 : f32
    %15 = vector.broadcast %cst_11 : f32 to vector<128x128xf32>
    %16 = arith.maximumf %14, %15 : vector<128x128xf32>
    %17 = arith.truncf %16 : vector<128x128xf32> to vector<128x128xbf16>
    %c0_12 = arith.constant 0 : index
    %c0_13 = arith.constant 0 : index
    %18 = vector.load %arg4[%c0_12, %c0_13] : memref<128x128xbf16, #tpu.memory_space<vmem>>, vector<128x128xbf16>
    %cst_14 = arith.constant dense<0.000000e+00> : vector<128x128xf32>
    %19 = tpu.matmul %17, %18, %cst_14 {dimension_numbers = #tpu.dot_dimension_numbers<[1], [0], [0], [1], [0, 0, 1, 1], [], []>} : vector<128x128xbf16>, vector<128x128xbf16>, vector<128x128xf32> -> vector<128x128xf32>
    %c0_15 = arith.constant 0 : index
    %c0_16 = arith.constant 0 : index
    %20 = vector.load %arg10[%c0_15, %c0_16] : memref<1x128xf32, #tpu.memory_space<vmem>>, vector<1x128xf32>
    %21 = vector.broadcast %20 : vector<1x128xf32> to vector<128x128xf32>
    %22 = arith.addf %19, %21 : vector<128x128xf32>
    %cst_17 = arith.constant 0.000000e+00 : f32
    %23 = vector.broadcast %cst_17 : f32 to vector<128x128xf32>
    %24 = arith.subf %23, %22 : vector<128x128xf32>
    %25 = math.exp %24 : vector<128x128xf32>
    %cst_18 = arith.constant 1.000000e+00 : f32
    %26 = vector.broadcast %cst_18 : f32 to vector<128x128xf32>
    %27 = arith.addf %26, %25 : vector<128x128xf32>
    %28 = tpu.reciprocal %27 {approx = true} : vector<128x128xf32> -> vector<128x128xf32>
    %29 = arith.truncf %28 : vector<128x128xf32> to vector<128x128xbf16>
    %c0_19 = arith.constant 0 : index
    %c0_20 = arith.constant 0 : index
    %30 = vector.load %arg5[%c0_19, %c0_20] : memref<128x128xbf16, #tpu.memory_space<vmem>>, vector<128x128xbf16>
    %cst_21 = arith.constant dense<0.000000e+00> : vector<128x128xf32>
    %31 = tpu.matmul %29, %30, %cst_21 {dimension_numbers = #tpu.dot_dimension_numbers<[1], [0], [0], [1], [0, 0, 1, 1], [], []>} : vector<128x128xbf16>, vector<128x128xbf16>, vector<128x128xf32> -> vector<128x128xf32>
    %c0_22 = arith.constant 0 : index
    %c0_23 = arith.constant 0 : index
    %32 = vector.load %arg11[%c0_22, %c0_23] : memref<1x128xf32, #tpu.memory_space<vmem>>, vector<1x128xf32>
    %33 = vector.broadcast %32 : vector<1x128xf32> to vector<128x128xf32>
    %34 = arith.addf %31, %33 : vector<128x128xf32>
    %cst_24 = arith.constant 0.000000e+00 : f32
    %35 = vector.broadcast %cst_24 : f32 to vector<128x128xf32>
    %36 = arith.maximumf %34, %35 : vector<128x128xf32>
    %37 = arith.truncf %36 : vector<128x128xf32> to vector<128x128xbf16>
    %c0_25 = arith.constant 0 : index
    %c0_26 = arith.constant 0 : index
    %38 = vector.load %arg6[%c0_25, %c0_26] : memref<128x128xbf16, #tpu.memory_space<vmem>>, vector<128x128xbf16>
    %cst_27 = arith.constant dense<0.000000e+00> : vector<128x128xf32>
    %39 = tpu.matmul %37, %38, %cst_27 {dimension_numbers = #tpu.dot_dimension_numbers<[1], [0], [0], [1], [0, 0, 1, 1], [], []>} : vector<128x128xbf16>, vector<128x128xbf16>, vector<128x128xf32> -> vector<128x128xf32>
    %c0_28 = arith.constant 0 : index
    %c0_29 = arith.constant 0 : index
    %40 = vector.load %arg12[%c0_28, %c0_29] : memref<1x128xf32, #tpu.memory_space<vmem>>, vector<1x128xf32>
    %41 = vector.broadcast %40 : vector<1x128xf32> to vector<128x128xf32>
    %42 = arith.addf %39, %41 : vector<128x128xf32>
    %cst_30 = arith.constant 0.000000e+00 : f32
    %43 = vector.broadcast %cst_30 : f32 to vector<128x128xf32>
    %44 = arith.maximumf %42, %43 : vector<128x128xf32>
    %45 = arith.truncf %44 : vector<128x128xf32> to vector<128x128xbf16>
    %c0_31 = arith.constant 0 : index
    %c0_32 = arith.constant 0 : index
    %46 = vector.load %arg7[%c0_31, %c0_32] : memref<128x128xbf16, #tpu.memory_space<vmem>>, vector<128x128xbf16>
    %cst_33 = arith.constant dense<0.000000e+00> : vector<128x128xf32>
    %47 = tpu.matmul %45, %46, %cst_33 {dimension_numbers = #tpu.dot_dimension_numbers<[1], [0], [0], [1], [0, 0, 1, 1], [], []>} : vector<128x128xbf16>, vector<128x128xbf16>, vector<128x128xf32> -> vector<128x128xf32>
    %c0_34 = arith.constant 0 : index
    %c0_35 = arith.constant 0 : index
    %48 = vector.load %arg13[%c0_34, %c0_35] : memref<1x128xf32, #tpu.memory_space<vmem>>, vector<1x128xf32>
    %49 = vector.broadcast %48 : vector<1x128xf32> to vector<128x128xf32>
    %50 = arith.addf %47, %49 : vector<128x128xf32>
    %c0_36 = arith.constant 0 : index
    %c0_37 = arith.constant 0 : index
    %51 = vector.load %arg14[%c0_36, %c0_37] : memref<128x128xf32, #tpu.memory_space<vmem>>, vector<128x128xf32>
    tpu.vector_store %arg14[%c0_36, %c0_37], %50 {strides = array<i32>} : memref<128x128xf32, #tpu.memory_space<vmem>>, vector<128x128xf32>,
    return
  }
  func.func @transform_0(%arg0: i32) -> (i32, i32) {
    %c0_i32 = arith.constant 0 : i32
    %c0_i32_0 = arith.constant 0 : i32
    return %arg0, %c0_i32 : i32, i32
  }
  func.func @transform_1(%arg0: i32) -> (i32, i32) {
    %c0_i32 = arith.constant 0 : i32
    %c0_i32_0 = arith.constant 0 : i32
    %c0_i32_1 = arith.constant 0 : i32
    return %c0_i32, %c0_i32_0 : i32, i32
  }
  func.func @transform_2(%arg0: i32) -> (i32, i32) {
    %c0_i32 = arith.constant 0 : i32
    %c0_i32_0 = arith.constant 0 : i32
    %c0_i32_1 = arith.constant 0 : i32
    return %c0_i32, %c0_i32_0 : i32, i32
  }
  func.func @transform_3(%arg0: i32) -> (i32, i32) {
    %c0_i32 = arith.constant 0 : i32
    %c0_i32_0 = arith.constant 0 : i32
    %c0_i32_1 = arith.constant 0 : i32
    return %c0_i32, %c0_i32_0 : i32, i32
  }
  func.func @transform_4(%arg0: i32) -> (i32, i32) {
    %c0_i32 = arith.constant 0 : i32
    %c0_i32_0 = arith.constant 0 : i32
    %c0_i32_1 = arith.constant 0 : i32
    return %c0_i32, %c0_i32_0 : i32, i32
  }
  func.func @transform_5(%arg0: i32) -> (i32, i32) {
    %c0_i32 = arith.constant 0 : i32
    %c0_i32_0 = arith.constant 0 : i32
    %c0_i32_1 = arith.constant 0 : i32
    return %c0_i32, %c0_i32_0 : i32, i32
  }
  func.func @transform_6(%arg0: i32) -> (i32, i32) {
    %c0_i32 = arith.constant 0 : i32
    %c0_i32_0 = arith.constant 0 : i32
    %c0_i32_1 = arith.constant 0 : i32
    return %c0_i32, %c0_i32_0 : i32, i32
  }
  func.func @transform_7(%arg0: i32) -> (i32, i32) {
    %c0_i32 = arith.constant 0 : i32
    %c0_i32_0 = arith.constant 0 : i32
    %c0_i32_1 = arith.constant 0 : i32
    return %c0_i32, %c0_i32_0 : i32, i32
  }
  func.func @transform_8(%arg0: i32) -> (i32, i32) {
    %c0_i32 = arith.constant 0 : i32
    %c0_i32_0 = arith.constant 0 : i32
    %c0_i32_1 = arith.constant 0 : i32
    return %c0_i32, %c0_i32_0 : i32, i32
  }
  func.func @transform_9(%arg0: i32) -> (i32, i32) {
    %c0_i32 = arith.constant 0 : i32
    %c0_i32_0 = arith.constant 0 : i32
    %c0_i32_1 = arith.constant 0 : i32
    return %c0_i32, %c0_i32_0 : i32, i32
  }
  func.func @transform_10(%arg0: i32) -> (i32, i32) {
    %c0_i32 = arith.constant 0 : i32
    %c0_i32_0 = arith.constant 0 : i32
    %c0_i32_1 = arith.constant 0 : i32
    return %c0_i32, %c0_i32_0 : i32, i32
  }
  func.func @transform_11(%arg0: i32) -> (i32, i32) {
    %c0_i32 = arith.constant 0 : i32
    %c0_i32_0 = arith.constant 0 : i32
    %c0_i32_1 = arith.constant 0 : i32
    return %c0_i32, %c0_i32_0 : i32, i32
  }
  func.func @transform_12(%arg0: i32) -> (i32, i32) {
    %c0_i32 = arith.constant 0 : i32
    %c0_i32_0 = arith.constant 0 : i32
    %c0_i32_1 = arith.constant 0 : i32
    return %c0_i32, %c0_i32_0 : i32, i32
  }
  func.func @transform_13(%arg0: i32) -> (i32, i32) {
    %c0_i32 = arith.constant 0 : i32
    %c0_i32_0 = arith.constant 0 : i32
    return %arg0, %c0_i32 : i32, i32
  }
}

</mosaic_0001>

<llo_original>
// kernel: autoencoder_forward.1
$region0: #{autoencoder_forward.1}
  #allocation0 [shape = 'u32[]', space=smem, size = 0x4, offset = 0x4, fixed_abs, tag = 'smem constant byte address 0x4 - core index']
  #allocation1 [shape = 'u32[144,128]{1,0:T(1,128)}', space=vmem, size = 0x12000, scoped, tag = 'internal scratch']
  %s0 = inlined_call_operand.vmem [shape: f32[256,128], index: 0, kind: input, shape index: {}]
  %s1 = inlined_call_operand.vmem [shape: bf16[128,128], index: 1, kind: input, shape index: {}]
  %s2 = inlined_call_operand.vmem [shape: bf16[128,128], index: 2, kind: input, shape index: {}]
  %s3 = inlined_call_operand.vmem [shape: bf16[128,128], index: 3, kind: input, shape index: {}]
  %s4 = inlined_call_operand.vmem [shape: bf16[128,128], index: 4, kind: input, shape index: {}]
  %s5 = inlined_call_operand.vmem [shape: bf16[128,128], index: 5, kind: input, shape index: {}]
  %s6 = inlined_call_operand.vmem [shape: bf16[128,128], index: 6, kind: input, shape index: {}]
  %s7 = inlined_call_operand.vmem [shape: f32[1,128], index: 7, kind: input, shape index: {}]
  %s8 = inlined_call_operand.vmem [shape: f32[1,128], index: 8, kind: input, shape index: {}]
  %s9 = inlined_call_operand.vmem [shape: f32[1,128], index: 9, kind: input, shape index: {}]
  %s10 = inlined_call_operand.vmem [shape: f32[1,128], index: 10, kind: input, shape index: {}]
  %s11 = inlined_call_operand.vmem [shape: f32[1,128], index: 11, kind: input, shape index: {}]
  %s12 = inlined_call_operand.vmem [shape: f32[1,128], index: 12, kind: input, shape index: {}]
  %s13 = inlined_call_operand.vmem [shape: f32[256,128], index: 13, kind: output, shape index: {}]
  %s14 = sld [smem:[#allocation0]]
  $region85: #{autoencoder_forward.1} parent=0
    _
  %s16 = ssub.s32 1, %s14
  %s17 = scalar_select 0, %s16, %s14
  loop: start=0, step=1, limit=4
  $region2: #{autoencoder_forward.1} parent=0 // loop_pre_header
    _
  $region3: #{autoencoder_forward.1} parent=0 // loop_header
    %s19 = sphi 0, %s23
    %p20 = scmp.ge.s32.totalorder %s19, 4
    %s29 = sphi 0, %s31
    %s32 = sphi 0, %s29
    %s33 = sphi 0, %s32
    %s49 = sphi 0, %s33
    %s53 = sphi 0, %s53
    %s55 = sphi 0, %s53
    %s56 = sphi 0, %s55
    %s70 = sphi 0, %s56
    %s74 = sphi 0, %s74
    %s76 = sphi 0, %s74
    %s77 = sphi 0, %s76
    %s91 = sphi 0, %s77
    %s95 = sphi 0, %s95
    %s97 = sphi 0, %s95
    %s98 = sphi 0, %s97
    %s112 = sphi 0, %s98
    %s116 = sphi 0, %s116
    %s118 = sphi 0, %s116
    %s119 = sphi 0, %s118
    %s133 = sphi 0, %s119
    %s137 = sphi 0, %s137
    %s139 = sphi 0, %s137
    %s140 = sphi 0, %s139
    %s154 = sphi 0, %s140
    %s158 = sphi 0, %s158
    %s160 = sphi 0, %s158
    %s161 = sphi 0, %s160
    %s175 = sphi 0, %s161
    %s179 = sphi 0, %s179
    %s181 = sphi 0, %s179
    %s182 = sphi 0, %s181
    %s196 = sphi 0, %s182
    %s200 = sphi 0, %s200
    %s202 = sphi 0, %s200
    %s203 = sphi 0, %s202
    %s217 = sphi 0, %s203
    %s221 = sphi 0, %s221
    %s223 = sphi 0, %s221
    %s224 = sphi 0, %s223
    %s238 = sphi 0, %s224
    %s242 = sphi 0, %s242
    %s244 = sphi 0, %s242
    %s245 = sphi 0, %s244
    %s259 = sphi 0, %s245
    %s263 = sphi 0, %s263
    %s265 = sphi 0, %s263
    %s266 = sphi 0, %s265
    %s280 = sphi 0, %s266
    %s284 = sphi 0, %s284
    %s286 = sphi 0, %s284
    %s287 = sphi 0, %s286
    %s301 = sphi 0, %s287
    %s307 = sphi 0, %s309
    %s310 = sphi 0, %s307
    %s311 = sphi 0, %s310
    %s327 = sphi 0, %s311
  $region4: #{autoencoder_forward.1} parent=0 // loop_header_branch
    %22 = sbr.rel (%p20) target = $region8
  $region5: #{autoencoder_forward.1} parent=0 // loop_body
    %s24 = ssub.s32 %s19, 1
    %s25 = ssub.s32 %s19, 2
    %s26 = sadd.s32 %s19, 1
    %s27 = ssub.s32 %s19, %s26
    %p28 = scmp.eq.s32.totalorder %s27, 0
    %s30 = sadd.s32 %s29, 1
    %s31 = scalar_select %p28, %s29, %s30
    %p34 = pneg %p28
    %p35 = scmp.eq.s32.totalorder %s19, 1
    %p36 = por %p34, %p35
    %p37 = scmp.ne.s32.totalorder %s29, %s32
    %p38 = scmp.eq.s32.totalorder %s19, 0
    %p39 = por %p37, %p38
    %p40 = scmp.ne.s32.totalorder %s29, %s32
    %p41 = scmp.eq.s32.totalorder %s24, 1
    %p42 = por %p40, %p41
    %p43 = scmp.ne.s32.totalorder %s32, %s33
    %p44 = scmp.eq.s32.totalorder %s24, 0
    %p45 = por %p43, %p44
    %p46 = scmp.ne.s32.totalorder %s32, %s33
    %p47 = scmp.eq.s32.totalorder %s25, 1
    %p48 = por %p46, %p47
    %p50 = scmp.ne.s32.totalorder %s33, %s49
    %p51 = scmp.eq.s32.totalorder %s25, 0
    %p52 = por %p50, %p51
    %s54 = sadd.s32 %s53, 1
    %p57 = scmp.eq.s32.totalorder %s19, 1
    %p58 = scmp.ne.s32.totalorder %s53, %s55
    %p59 = scmp.eq.s32.totalorder %s19, 0
    %p60 = por %p58, %p59
    %p61 = scmp.ne.s32.totalorder %s53, %s55
    %p62 = scmp.eq.s32.totalorder %s24, 1
    %p63 = por %p61, %p62
    %p64 = scmp.ne.s32.totalorder %s55, %s56
    %p65 = scmp.eq.s32.totalorder %s24, 0
    %p66 = por %p64, %p65
    %p67 = scmp.ne.s32.totalorder %s55, %s56
    %p68 = scmp.eq.s32.totalorder %s25, 1
    %p69 = por %p67, %p68
    %p71 = scmp.ne.s32.totalorder %s56, %s70
    %p72 = scmp.eq.s32.totalorder %s25, 0
    %p73 = por %p71, %p72
    %s75 = sadd.s32 %s74, 1
    %p78 = scmp.eq.s32.totalorder %s19, 1
    %p79 = scmp.ne.s32.totalorder %s74, %s76
    %p80 = scmp.eq.s32.totalorder %s19, 0
    %p81 = por %p79, %p80
    %p82 = scmp.ne.s32.totalorder %s74, %s76
    %p83 = scmp.eq.s32.totalorder %s24, 1
    %p84 = por %p82, %p83
    %p85 = scmp.ne.s32.totalorder %s76, %s77
    %p86 = scmp.eq.s32.totalorder %s24, 0
    %p87 = por %p85, %p86
    %p88 = scmp.ne.s32.totalorder %s76, %s77
    %p89 = scmp.eq.s32.totalorder %s25, 1
    %p90 = por %p88, %p89
    %p92 = scmp.ne.s32.totalorder %s77, %s91
    %p93 = scmp.eq.s32.totalorder %s25, 0
    %p94 = por %p92, %p93
    %s96 = sadd.s32 %s95, 1
    %p99 = scmp.eq.s32.totalorder %s19, 1
    %p100 = scmp.ne.s32.totalorder %s95, %s97
    %p101 = scmp.eq.s32.totalorder %s19, 0
    %p102 = por %p100, %p101
    %p103 = scmp.ne.s32.totalorder %s95, %s97
    %p104 = scmp.eq.s32.totalorder %s24, 1
    %p105 = por %p103, %p104
    %p106 = scmp.ne.s32.totalorder %s97, %s98
    %p107 = scmp.eq.s32.totalorder %s24, 0
    %p108 = por %p106, %p107
    %p109 = scmp.ne.s32.totalorder %s97, %s98
    %p110 = scmp.eq.s32.totalorder %s25, 1
    %p111 = por %p109, %p110
    %p113 = scmp.ne.s32.totalorder %s98, %s112
    %p114 = scmp.eq.s32.totalorder %s25, 0
    %p115 = por %p113, %p114
    %s117 = sadd.s32 %s116, 1
    %p120 = scmp.eq.s32.totalorder %s19, 1
    %p121 = scmp.ne.s32.totalorder %s116, %s118
    %p122 = scmp.eq.s32.totalorder %s19, 0
    %p123 = por %p121, %p122
    %p124 = scmp.ne.s32.totalorder %s116, %s118
    %p125 = scmp.eq.s32.totalorder %s24, 1
    %p126 = por %p124, %p125
    %p127 = scmp.ne.s32.totalorder %s118, %s119
    %p128 = scmp.eq.s32.totalorder %s24, 0
    %p129 = por %p127, %p128
    %p130 = scmp.ne.s32.totalorder %s118, %s119
    %p131 = scmp.eq.s32.totalorder %s25, 1
    %p132 = por %p130, %p131
    %p134 = scmp.ne.s32.totalorder %s119, %s133
    %p135 = scmp.eq.s32.totalorder %s25, 0
    %p136 = por %p134, %p135
    %s138 = sadd.s32 %s137, 1
    %p141 = scmp.eq.s32.totalorder %s19, 1
    %p142 = scmp.ne.s32.totalorder %s137, %s139
    %p143 = scmp.eq.s32.totalorder %s19, 0
    %p144 = por %p142, %p143
    %p145 = scmp.ne.s32.totalorder %s137, %s139
    %p146 = scmp.eq.s32.totalorder %s24, 1
    %p147 = por %p145, %p146
    %p148 = scmp.ne.s32.totalorder %s139, %s140
    %p149 = scmp.eq.s32.totalorder %s24, 0
    %p150 = por %p148, %p149
    %p151 = scmp.ne.s32.totalorder %s139, %s140
    %p152 = scmp.eq.s32.totalorder %s25, 1
    %p153 = por %p151, %p152
    %p155 = scmp.ne.s32.totalorder %s140, %s154
    %p156 = scmp.eq.s32.totalorder %s25, 0
    %p157 = por %p155, %p156
    %s159 = sadd.s32 %s158, 1
    %p162 = scmp.eq.s32.totalorder %s19, 1
    %p163 = scmp.ne.s32.totalorder %s158, %s160
    %p164 = scmp.eq.s32.totalorder %s19, 0
    %p165 = por %p163, %p164
    %p166 = scmp.ne.s32.totalorder %s158, %s160
    %p167 = scmp.eq.s32.totalorder %s24, 1
    %p168 = por %p166, %p167
    %p169 = scmp.ne.s32.totalorder %s160, %s161
    %p170 = scmp.eq.s32.totalorder %s24, 0
    %p171 = por %p169, %p170
    %p172 = scmp.ne.s32.totalorder %s160, %s161
    %p173 = scmp.eq.s32.totalorder %s25, 1
    %p174 = por %p172, %p173
    %p176 = scmp.ne.s32.totalorder %s161, %s175
    %p177 = scmp.eq.s32.totalorder %s25, 0
    %p178 = por %p176, %p177
    %s180 = sadd.s32 %s179, 1
    %p183 = scmp.eq.s32.totalorder %s19, 1
    %p184 = scmp.ne.s32.totalorder %s179, %s181
    %p185 = scmp.eq.s32.totalorder %s19, 0
    %p186 = por %p184, %p185
    %p187 = scmp.ne.s32.totalorder %s179, %s181
    %p188 = scmp.eq.s32.totalorder %s24, 1
    %p189 = por %p187, %p188
    %p190 = scmp.ne.s32.totalorder %s181, %s182
    %p191 = scmp.eq.s32.totalorder %s24, 0
    %p192 = por %p190, %p191
    %p193 = scmp.ne.s32.totalorder %s181, %s182
    %p194 = scmp.eq.s32.totalorder %s25, 1
    %p195 = por %p193, %p194
    %p197 = scmp.ne.s32.totalorder %s182, %s196
    %p198 = scmp.eq.s32.totalorder %s25, 0
    %p199 = por %p197, %p198
    %s201 = sadd.s32 %s200, 1
    %p204 = scmp.eq.s32.totalorder %s19, 1
    %p205 = scmp.ne.s32.totalorder %s200, %s202
    %p206 = scmp.eq.s32.totalorder %s19, 0
    %p207 = por %p205, %p206
    %p208 = scmp.ne.s32.totalorder %s200, %s202
    %p209 = scmp.eq.s32.totalorder %s24, 1
    %p210 = por %p208, %p209
    %p211 = scmp.ne.s32.totalorder %s202, %s203
    %p212 = scmp.eq.s32.totalorder %s24, 0
    %p213 = por %p211, %p212
    %p214 = scmp.ne.s32.totalorder %s202, %s203
    %p215 = scmp.eq.s32.totalorder %s25, 1
    %p216 = por %p214, %p215
    %p218 = scmp.ne.s32.totalorder %s203, %s217
    %p219 = scmp.eq.s32.totalorder %s25, 0
    %p220 = por %p218, %p219
    %s222 = sadd.s32 %s221, 1
    %p225 = scmp.eq.s32.totalorder %s19, 1
    %p226 = scmp.ne.s32.totalorder %s221, %s223
    %p227 = scmp.eq.s32.totalorder %s19, 0
    %p228 = por %p226, %p227
    %p229 = scmp.ne.s32.totalorder %s221, %s223
    %p230 = scmp.eq.s32.totalorder %s24, 1
    %p231 = por %p229, %p230
    %p232 = scmp.ne.s32.totalorder %s223, %s224
    %p233 = scmp.eq.s32.totalorder %s24, 0
    %p234 = por %p232, %p233
    %p235 = scmp.ne.s32.totalorder %s223, %s224
    %p236 = scmp.eq.s32.totalorder %s25, 1
    %p237 = por %p235, %p236
    %p239 = scmp.ne.s32.totalorder %s224, %s238
    %p240 = scmp.eq.s32.totalorder %s25, 0
    %p241 = por %p239, %p240
    %s243 = sadd.s32 %s242, 1
    %p246 = scmp.eq.s32.totalorder %s19, 1
    %p247 = scmp.ne.s32.totalorder %s242, %s244
    %p248 = scmp.eq.s32.totalorder %s19, 0
    %p249 = por %p247, %p248
    %p250 = scmp.ne.s32.totalorder %s242, %s244
    %p251 = scmp.eq.s32.totalorder %s24, 1
    %p252 = por %p250, %p251
    %p253 = scmp.ne.s32.totalorder %s244, %s245
    %p254 = scmp.eq.s32.totalorder %s24, 0
    %p255 = por %p253, %p254
    %p256 = scmp.ne.s32.totalorder %s244, %s245
    %p257 = scmp.eq.s32.totalorder %s25, 1
    %p258 = por %p256, %p257
    %p260 = scmp.ne.s32.totalorder %s245, %s259
    %p261 = scmp.eq.s32.totalorder %s25, 0
    %p262 = por %p260, %p261
    %s264 = sadd.s32 %s263, 1
    %p267 = scmp.eq.s32.totalorder %s19, 1
    %p268 = scmp.ne.s32.totalorder %s263, %s265
    %p269 = scmp.eq.s32.totalorder %s19, 0
    %p270 = por %p268, %p269
    %p271 = scmp.ne.s32.totalorder %s263, %s265
    %p272 = scmp.eq.s32.totalorder %s24, 1
    %p273 = por %p271, %p272
    %p274 = scmp.ne.s32.totalorder %s265, %s266
    %p275 = scmp.eq.s32.totalorder %s24, 0
    %p276 = por %p274, %p275
    %p277 = scmp.ne.s32.totalorder %s265, %s266
    %p278 = scmp.eq.s32.totalorder %s25, 1
    %p279 = por %p277, %p278
    %p281 = scmp.ne.s32.totalorder %s266, %s280
    %p282 = scmp.eq.s32.totalorder %s25, 0
    %p283 = por %p281, %p282
    %s285 = sadd.s32 %s284, 1
    %p288 = scmp.eq.s32.totalorder %s19, 1
    %p289 = scmp.ne.s32.totalorder %s284, %s286
    %p290 = scmp.eq.s32.totalorder %s19, 0
    %p291 = por %p289, %p290
    %p292 = scmp.ne.s32.totalorder %s284, %s286
    %p293 = scmp.eq.s32.totalorder %s24, 1
    %p294 = por %p292, %p293
    %p295 = scmp.ne.s32.totalorder %s286, %s287
    %p296 = scmp.eq.s32.totalorder %s24, 0
    %p297 = por %p295, %p296
    %p298 = scmp.ne.s32.totalorder %s286, %s287
    %p299 = scmp.eq.s32.totalorder %s25, 1
    %p300 = por %p298, %p299
    %p302 = scmp.ne.s32.totalorder %s287, %s301
    %p303 = scmp.eq.s32.totalorder %s25, 0
    %p304 = por %p302, %p303
    %s305 = ssub.s32 %s19, %s26
    %p306 = scmp.eq.s32.totalorder %s305, 0
    %s308 = sadd.s32 %s307, 1
    %s309 = scalar_select %p306, %s307, %s308
    %p312 = pneg %p306
    %p313 = scmp.eq.s32.totalorder %s19, 1
    %p314 = por %p312, %p313
    %p315 = scmp.ne.s32.totalorder %s307, %s310
    %p316 = scmp.eq.s32.totalorder %s19, 0
    %p317 = por %p315, %p316
    %p318 = scmp.ne.s32.totalorder %s307, %s310
    %p319 = scmp.eq.s32.totalorder %s24, 1
    %p320 = por %p318, %p319
    %p321 = scmp.ne.s32.totalorder %s310, %s311
    %p322 = scmp.eq.s32.totalorder %s24, 0
    %p323 = por %p321, %p322
    %p324 = scmp.ne.s32.totalorder %s310, %s311
    %p325 = scmp.eq.s32.totalorder %s25, 1
    %p326 = por %p324, %p325
    %p328 = scmp.ne.s32.totalorder %s311, %s327
    %p329 = scmp.eq.s32.totalorder %s25, 0
    %p330 = por %p328, %p329
    %p331 = scmp.le.s32.totalorder 1, %s19
    %p332 = scmp.lt.s32.totalorder %s19, 3
    %p333 = pnand %p331, %p332
    %p334 = pneg %p333
    // Predicated region
    $region9: #{autoencoder_forward.1} parent=5 // pred_check
      _
    $region10: #{autoencoder_forward.1} parent=5 // pred_check_branch
      %336 = sbr.rel (%p333) target = $region12
    $region11: #{autoencoder_forward.1} parent=5 // pred_region
      %s337 = ssub.s32 %s19, 1
      // Predicated region
      $region13: #{autoencoder_forward.1} parent=11 // pred_check
        %p338 = pneg %p66
      $region14: #{autoencoder_forward.1} parent=11 // pred_check_branch
        %340 = sbr.rel (%p338) target = $region16
      $region15: #{autoencoder_forward.1} parent=11 // pred_region
        _
      $region16: #{autoencoder_forward.1} parent=11 // pred_fallthru
        _
      // Predicated region
      $region17: #{autoencoder_forward.1} parent=11 // pred_check
        %p341 = pneg %p87
      $region18: #{autoencoder_forward.1} parent=11 // pred_check_branch
        %343 = sbr.rel (%p341) target = $region20
      $region19: #{autoencoder_forward.1} parent=11 // pred_region
        _
      $region20: #{autoencoder_forward.1} parent=11 // pred_fallthru
        _
      // Predicated region
      $region21: #{autoencoder_forward.1} parent=11 // pred_check
        %p344 = pneg %p108
      $region22: #{autoencoder_forward.1} parent=11 // pred_check_branch
        %346 = sbr.rel (%p344) target = $region24
      $region23: #{autoencoder_forward.1} parent=11 // pred_region
        _
      $region24: #{autoencoder_forward.1} parent=11 // pred_fallthru
        _
      // Predicated region
      $region25: #{autoencoder_forward.1} parent=11 // pred_check
        %p347 = pneg %p129
      $region26: #{autoencoder_forward.1} parent=11 // pred_check_branch
        %349 = sbr.rel (%p347) target = $region28
      $region27: #{autoencoder_forward.1} parent=11 // pred_region
        _
      $region28: #{autoencoder_forward.1} parent=11 // pred_fallthru
        _
      // Predicated region
      $region29: #{autoencoder_forward.1} parent=11 // pred_check
        %p350 = pneg %p150
      $region30: #{autoencoder_forward.1} parent=11 // pred_check_branch
        %352 = sbr.rel (%p350) target = $region32
      $region31: #{autoencoder_forward.1} parent=11 // pred_region
        _
      $region32: #{autoencoder_forward.1} parent=11 // pred_fallthru
        _
      // Predicated region
      $region33: #{autoencoder_forward.1} parent=11 // pred_check
        %p353 = pneg %p171
      $region34: #{autoencoder_forward.1} parent=11 // pred_check_branch
        %355 = sbr.rel (%p353) target = $region36
      $region35: #{autoencoder_forward.1} parent=11 // pred_region
        _
      $region36: #{autoencoder_forward.1} parent=11 // pred_fallthru
        _
      // Predicated region
      $region37: #{autoencoder_forward.1} parent=11 // pred_check
        %p356 = pneg %p192
      $region38: #{autoencoder_forward.1} parent=11 // pred_check_branch
        %358 = sbr.rel (%p356) target = $region40
      $region39: #{autoencoder_forward.1} parent=11 // pred_region
        _
      $region40: #{autoencoder_forward.1} parent=11 // pred_fallthru
        _
      // Predicated region
      $region41: #{autoencoder_forward.1} parent=11 // pred_check
        %p359 = pneg %p213
      $region42: #{autoencoder_forward.1} parent=11 // pred_check_branch
        %361 = sbr.rel (%p359) target = $region44
      $region43: #{autoencoder_forward.1} parent=11 // pred_region
        _
      $region44: #{autoencoder_forward.1} parent=11 // pred_fallthru
        _
      // Predicated region
      $region45: #{autoencoder_forward.1} parent=11 // pred_check
        %p362 = pneg %p234
      $region46: #{autoencoder_forward.1} parent=11 // pred_check_branch
        %364 = sbr.rel (%p362) target = $region48
      $region47: #{autoencoder_forward.1} parent=11 // pred_region
        _
      $region48: #{autoencoder_forward.1} parent=11 // pred_fallthru
        _
      // Predicated region
      $region49: #{autoencoder_forward.1} parent=11 // pred_check
        %p365 = pneg %p255
      $region50: #{autoencoder_forward.1} parent=11 // pred_check_branch
        %367 = sbr.rel (%p365) target = $region52
      $region51: #{autoencoder_forward.1} parent=11 // pred_region
        _
      $region52: #{autoencoder_forward.1} parent=11 // pred_fallthru
        _
      // Predicated region
      $region53: #{autoencoder_forward.1} parent=11 // pred_check
        %p368 = pneg %p276
      $region54: #{autoencoder_forward.1} parent=11 // pred_check_branch
        %370 = sbr.rel (%p368) target = $region56
      $region55: #{autoencoder_forward.1} parent=11 // pred_region
        _
      $region56: #{autoencoder_forward.1} parent=11 // pred_fallthru
        _
      // Predicated region
      $region57: #{autoencoder_forward.1} parent=11 // pred_check
        %p371 = pneg %p297
      $region58: #{autoencoder_forward.1} parent=11 // pred_check_branch
        %373 = sbr.rel (%p371) target = $region60
      $region59: #{autoencoder_forward.1} parent=11 // pred_region
        _
      $region60: #{autoencoder_forward.1} parent=11 // pred_fallthru
        _
    $region12: #{autoencoder_forward.1} parent=5 // pred_fallthru
      _
    %p374 = scmp.lt.s32.totalorder %s19, 2
    // Predicated region
    $region61: #{autoencoder_forward.1} parent=5 // pred_check
      %p375 = pneg %p374
    $region62: #{autoencoder_forward.1} parent=5 // pred_check_branch
      %377 = sbr.rel (%p375) target = $region64
    $region63: #{autoencoder_forward.1} parent=5 // pred_region
      // Predicated region
      $region65: #{autoencoder_forward.1} parent=63 // pred_check
        %p378 = pneg %p39
      $region66: #{autoencoder_forward.1} parent=63 // pred_check_branch
        %380 = sbr.rel (%p378) target = $region68
      $region67: #{autoencoder_forward.1} parent=63 // pred_region
        %s381 = smul.u32 16, %s19
        %p382 = scmp.lt.s32.totalorder %s381, 31
        %s383 = scalar_select %p382, %s381, 31
        %s384 = smul.addr %s383, 8
        %s385 = scalar_lea.vmem %s0, %s384
        %s386 = smul.u32 16, %s19
      $region68: #{autoencoder_forward.1} parent=63 // pred_fallthru
        _
    $region64: #{autoencoder_forward.1} parent=5 // pred_fallthru
      _
    %p387 = scmp.le.s32.totalorder 1, %s19
    %p388 = scmp.lt.s32.totalorder %s19, 3
    %p389 = pnand %p387, %p388
    %p390 = pneg %p389
    // Predicated region
    $region69: #{autoencoder_forward.1} parent=5 // pred_check
      _
    $region70: #{autoencoder_forward.1} parent=5 // pred_check_branch
      %392 = sbr.rel (%p389) target = $region72
    $region71: #{autoencoder_forward.1} parent=5 // pred_region
      %s393 = ssub.s32 %s19, 1
      %s394 = smul.u32 16, %s24
      %p395 = scmp.lt.s32.totalorder %s394, 31
      %s396 = scalar_select %p395, %s394, 31
      %s397 = smul.addr %s396, 8
      %s398 = scalar_lea.vmem %s0, %s397
      %p399 = pneg %p45
      %p400 = pneg %p42
      %p401 = pneg %p66
      %p402 = pneg %p63
      %p403 = pneg %p87
      %p404 = pneg %p84
      %p405 = pneg %p108
      %p406 = pneg %p105
      %p407 = pneg %p129
      %p408 = pneg %p126
      %p409 = pneg %p150
      %p410 = pneg %p147
      %p411 = pneg %p171
      %p412 = pneg %p168
      %p413 = pneg %p192
      %p414 = pneg %p189
      %p415 = pneg %p213
      %p416 = pneg %p210
      %p417 = pneg %p234
      %p418 = pneg %p231
      %p419 = pneg %p255
      %p420 = pneg %p252
      %p421 = pneg %p276
      %p422 = pneg %p273
      %p423 = pneg %p297
      %p424 = pneg %p294
      %p425 = pneg %p323
      %p426 = pneg %p320
      %s427 = smul.u32 16, %s24
      %p428 = scmp.lt.s32.totalorder %s427, 31
      %s429 = scalar_select %p428, %s427, 31
      %s430 = smul.addr %s429, 8
      %s431 = scalar_lea.vmem %s13, %s430
      %s432 = smul.u32 16, %s24
      %p433 = scmp.lt.s32.totalorder %s432, 31
      %s434 = scalar_select %p433, %s432, 31
      %s435 = smul.addr %s434, 8
      %s436 = scalar_lea.vmem %s0, %s435
      %s437 = smul.u32 16, %s24
      %s438 = smul.u32 16, %s24
      %p439 = scmp.lt.s32.totalorder %s438, 31
      %s440 = scalar_select %p439, %s438, 31
      %s441 = smul.addr %s440, 8
      %s442 = scalar_lea.vmem %s13, %s441
      %s443 = smul.u32 16, %s24
      %v445 = vld [vmem:[%s436] sm:$0xff]
      %v446 = vld [vmem:[%s436 + $0x8] sm:$0xff]
      %v447 = vld [vmem:[%s436 + $0x10] sm:$0xff]
      %v448 = vld [vmem:[%s436 + $0x18] sm:$0xff]
      %v449 = vld [vmem:[%s436 + $0x20] sm:$0xff]
      %v450 = vld [vmem:[%s436 + $0x28] sm:$0xff]
      %v451 = vld [vmem:[%s436 + $0x30] sm:$0xff]
      %v452 = vld [vmem:[%s436 + $0x38] sm:$0xff]
      %v453 = vld [vmem:[%s436 + $0x40] sm:$0xff]
      %v454 = vld [vmem:[%s436 + $0x48] sm:$0xff]
      %v455 = vld [vmem:[%s436 + $0x50] sm:$0xff]
      %v456 = vld [vmem:[%s436 + $0x58] sm:$0xff]
      %v457 = vld [vmem:[%s436 + $0x60] sm:$0xff]
      %v458 = vld [vmem:[%s436 + $0x68] sm:$0xff]
      %v459 = vld [vmem:[%s436 + $0x70] sm:$0xff]
      %v460 = vld [vmem:[%s436 + $0x78] sm:$0xff]
      %v461 = vpack.c.bf16 %v446, %v445
      %v462 = vpack.c.bf16 %v448, %v447
      %v463 = vpack.c.bf16 %v450, %v449
      %v464 = vpack.c.bf16 %v452, %v451
      %v465 = vpack.c.bf16 %v454, %v453
      %v466 = vpack.c.bf16 %v456, %v455
      %v467 = vpack.c.bf16 %v458, %v457
      %v468 = vpack.c.bf16 %v460, %v459
      %v469 = vld [vmem:[%s1] sm:$0xf]
      %v470 = vld [vmem:[%s1 + $0x4] sm:$0xf]
      %v471 = vld [vmem:[%s1 + $0x8] sm:$0xf]
      %v472 = vld [vmem:[%s1 + $0xc] sm:$0xf]
      %v473 = vld [vmem:[%s1 + $0x10] sm:$0xf]
      %v474 = vld [vmem:[%s1 + $0x14] sm:$0xf]
      %v475 = vld [vmem:[%s1 + $0x18] sm:$0xf]
      %v476 = vld [vmem:[%s1 + $0x1c] sm:$0xf]
      %v477 = vld [vmem:[%s1 + $0x20] sm:$0xf]
      %v478 = vld [vmem:[%s1 + $0x24] sm:$0xf]
      %v479 = vld [vmem:[%s1 + $0x28] sm:$0xf]
      %v480 = vld [vmem:[%s1 + $0x2c] sm:$0xf]
      %v481 = vld [vmem:[%s1 + $0x30] sm:$0xf]
      %v482 = vld [vmem:[%s1 + $0x34] sm:$0xf]
      %v483 = vld [vmem:[%s1 + $0x38] sm:$0xf]
      %v484 = vld [vmem:[%s1 + $0x3c] sm:$0xf]
      %v485 = vld [vmem:[%s7] sm:$0x1]
      %v487 = vlaneseq
      %v488 = vshrl.u32 %v487, 7
      %v489 = vsub.s32 0, %v488
      %v490 = vrot.slane %v485, %v489
      %v508 = vunpack.c.l.b16 %v469
      %v509 = vunpack.c.l.b16 %v470
      %v510 = vunpack.c.l.b16 %v471
      %v511 = vunpack.c.l.b16 %v472
      %v512 = vunpack.c.l.b16 %v473
      %v513 = vunpack.c.l.b16 %v474
      %v514 = vunpack.c.l.b16 %v475
      %v515 = vunpack.c.l.b16 %v476
      %v516 = vunpack.c.l.b16 %v477
      %v517 = vunpack.c.l.b16 %v478
      %v518 = vunpack.c.l.b16 %v479
      %v519 = vunpack.c.l.b16 %v480
      %v520 = vunpack.c.l.b16 %v481
      %v521 = vunpack.c.l.b16 %v482
      %v522 = vunpack.c.l.b16 %v483
      %v523 = vunpack.c.l.b16 %v484
      %v524 = vpack.c.b16 %v509, %v508
      %v525 = vpack.c.b16 %v511, %v510
      %v526 = vpack.c.b16 %v513, %v512
      %v527 = vpack.c.b16 %v515, %v514
      %v528 = vpack.c.b16 %v517, %v516
      %v529 = vpack.c.b16 %v519, %v518
      %v530 = vpack.c.b16 %v521, %v520
      %v531 = vpack.c.b16 %v523, %v522
      %540 = vmatprep.subr.bf16.mxu0 0
      %541 = vmatpush1.bf16.msra.mxu0 %v531
      %542 = vmatprep.subr.bf16.mxu0 0
      %543 = vmatpush1.bf16.msra.mxu0 %v530
      %544 = vmatprep.subr.bf16.mxu0 0
      %545 = vmatpush1.bf16.msra.mxu0 %v529
      %546 = vmatprep.subr.bf16.mxu0 0
      %547 = vmatpush1.bf16.msra.mxu0 %v528
      %548 = vmatprep.subr.bf16.mxu0 0
      %549 = vmatpush1.bf16.msra.mxu0 %v527
      %550 = vmatprep.subr.bf16.mxu0 0
      %551 = vmatpush1.bf16.msra.mxu0 %v526
      %552 = vmatprep.subr.bf16.mxu0 0
      %553 = vmatpush1.bf16.msra.mxu0 %v525
      %554 = vmatprep.subr.bf16.mxu0 0
      %555 = vmatpush1.bf16.msra.mxu0 %v524
      %556 = vmatprep.subr.bf16.mxu0 0
      %557 = vmatpush2.bf16.msra.mxu0 0
      %558 = vmatprep.subr.bf16.mxu0 0
      %559 = vmatpush2.bf16.msra.mxu0 0
      %560 = vmatprep.subr.bf16.mxu0 0
      %561 = vmatpush2.bf16.msra.mxu0 0
      %562 = vmatprep.subr.bf16.mxu0 0
      %563 = vmatpush2.bf16.msra.mxu0 0
      %564 = vmatprep.subr.bf16.mxu0 0
      %565 = vmatpush2.bf16.msra.mxu0 0
      %566 = vmatprep.subr.bf16.mxu0 0
      %567 = vmatpush2.bf16.msra.mxu0 0
      %568 = vmatprep.subr.bf16.mxu0 0
      %569 = vmatpush2.bf16.msra.mxu0 0
      %570 = vmatprep.subr.bf16.mxu0 0
      %571 = vmatpush2.bf16.msra.mxu0 0
      %572 = vmatprep.mubr.bf16.mxu0 0
      %573 = vmatmul.mubr.bf16.gmra.mxu0 %v461
      %v574 = vpop.f32.mrf.mxu0
      %v575 = vadd.f32 %v490, %v574
      %v576 = vpop.f32.mrf.mxu0
      %v577 = vpop.f32.mrf.mxu0
      %v578 = vadd.f32 %v490, %v577
      %v579 = vpop.f32.mrf.mxu0
      %580 = vmatprep.mubr.bf16.mxu0 0
      %581 = vmatmul.mubr.bf16.gmra.mxu0 %v462
      %v582 = vpop.f32.mrf.mxu0
      %v583 = vadd.f32 %v490, %v582
      %v584 = vpop.f32.mrf.mxu0
      %v585 = vpop.f32.mrf.mxu0
      %v586 = vadd.f32 %v490, %v585
      %v587 = vpop.f32.mrf.mxu0
      %588 = vmatprep.mubr.bf16.mxu0 0
      %589 = vmatmul.mubr.bf16.gmra.mxu0 %v463
      %v590 = vpop.f32.mrf.mxu0
      %v591 = vadd.f32 %v490, %v590
      %v592 = vpop.f32.mrf.mxu0
      %v593 = vpop.f32.mrf.mxu0
      %v594 = vadd.f32 %v490, %v593
      %v595 = vpop.f32.mrf.mxu0
      %596 = vmatprep.mubr.bf16.mxu0 0
      %597 = vmatmul.mubr.bf16.gmra.mxu0 %v464
      %v598 = vpop.f32.mrf.mxu0
      %v599 = vadd.f32 %v490, %v598
      %v600 = vpop.f32.mrf.mxu0
      %v601 = vpop.f32.mrf.mxu0
      %v602 = vadd.f32 %v490, %v601
      %v603 = vpop.f32.mrf.mxu0
      %604 = vmatprep.mubr.bf16.mxu0 0
      %605 = vmatmul.mubr.bf16.gmra.mxu0 %v465
      %v606 = vpop.f32.mrf.mxu0
      %v607 = vadd.f32 %v490, %v606
      %v608 = vpop.f32.mrf.mxu0
      %v609 = vpop.f32.mrf.mxu0
      %v610 = vadd.f32 %v490, %v609
      %v611 = vpop.f32.mrf.mxu0
      %612 = vmatprep.mubr.bf16.mxu0 0
      %613 = vmatmul.mubr.bf16.gmra.mxu0 %v466
      %v614 = vpop.f32.mrf.mxu0
      %v615 = vadd.f32 %v490, %v614
      %v616 = vpop.f32.mrf.mxu0
      %v617 = vpop.f32.mrf.mxu0
      %v618 = vadd.f32 %v490, %v617
      %v619 = vpop.f32.mrf.mxu0
      %620 = vmatprep.mubr.bf16.mxu0 0
      %621 = vmatmul.mubr.bf16.gmra.mxu0 %v467
      %v622 = vpop.f32.mrf.mxu0
      %v623 = vadd.f32 %v490, %v622
      %v624 = vpop.f32.mrf.mxu0
      %v625 = vpop.f32.mrf.mxu0
      %v626 = vadd.f32 %v490, %v625
      %v627 = vpop.f32.mrf.mxu0
      %628 = vmatprep.mubr.bf16.mxu0 0
      %629 = vmatmul.mubr.bf16.gmra.mxu0 %v468
      %v630 = vpop.f32.mrf.mxu0
      %v631 = vadd.f32 %v490, %v630
      %v632 = vpop.f32.mrf.mxu0
      %v633 = vpop.f32.mrf.mxu0
      %v634 = vadd.f32 %v490, %v633
      %v635 = vpop.f32.mrf.mxu0
      %636 = vdwg.mxu0
      %v637 = vmax.f32 %v575, 0.0
      %v638 = vmax.f32 %v578, 0.0
      %v639 = vmax.f32 %v583, 0.0
      %v640 = vmax.f32 %v586, 0.0
      %v641 = vmax.f32 %v591, 0.0
      %v642 = vmax.f32 %v594, 0.0
      %v643 = vmax.f32 %v599, 0.0
      %v644 = vmax.f32 %v602, 0.0
      %v645 = vmax.f32 %v607, 0.0
      %v646 = vmax.f32 %v610, 0.0
      %v647 = vmax.f32 %v615, 0.0
      %v648 = vmax.f32 %v618, 0.0
      %v649 = vmax.f32 %v623, 0.0
      %v650 = vmax.f32 %v626, 0.0
      %v651 = vmax.f32 %v631, 0.0
      %v652 = vmax.f32 %v634, 0.0
      %v653 = vpack.c.bf16 %v638, %v637
      %v654 = vpack.c.bf16 %v640, %v639
      %v655 = vpack.c.bf16 %v642, %v641
      %v656 = vpack.c.bf16 %v644, %v643
      %v657 = vpack.c.bf16 %v646, %v645
      %v658 = vpack.c.bf16 %v648, %v647
      %v659 = vpack.c.bf16 %v650, %v649
      %v660 = vpack.c.bf16 %v652, %v651
      %v661 = vld [vmem:[%s2] sm:$0xf]
      %v662 = vld [vmem:[%s2 + $0x4] sm:$0xf]
      %v663 = vld [vmem:[%s2 + $0x8] sm:$0xf]
      %v664 = vld [vmem:[%s2 + $0xc] sm:$0xf]
      %v665 = vld [vmem:[%s2 + $0x10] sm:$0xf]
      %v666 = vld [vmem:[%s2 + $0x14] sm:$0xf]
      %v667 = vld [vmem:[%s2 + $0x18] sm:$0xf]
      %v668 = vld [vmem:[%s2 + $0x1c] sm:$0xf]
      %v669 = vld [vmem:[%s2 + $0x20] sm:$0xf]
      %v670 = vld [vmem:[%s2 + $0x24] sm:$0xf]
      %v671 = vld [vmem:[%s2 + $0x28] sm:$0xf]
      %v672 = vld [vmem:[%s2 + $0x2c] sm:$0xf]
      %v673 = vld [vmem:[%s2 + $0x30] sm:$0xf]
      %v674 = vld [vmem:[%s2 + $0x34] sm:$0xf]
      %v675 = vld [vmem:[%s2 + $0x38] sm:$0xf]
      %v676 = vld [vmem:[%s2 + $0x3c] sm:$0xf]
      %v677 = vld [vmem:[%s8] sm:$0x1]
      %v679 = vlaneseq
      %v680 = vshrl.u32 %v679, 7
      %v681 = vsub.s32 0, %v680
      %v682 = vrot.slane %v677, %v681
      %v700 = vunpack.c.l.b16 %v661
      %v701 = vunpack.c.l.b16 %v662
      %v702 = vunpack.c.l.b16 %v663
      %v703 = vunpack.c.l.b16 %v664
      %v704 = vunpack.c.l.b16 %v665
      %v705 = vunpack.c.l.b16 %v666
      %v706 = vunpack.c.l.b16 %v667
      %v707 = vunpack.c.l.b16 %v668
      %v708 = vunpack.c.l.b16 %v669
      %v709 = vunpack.c.l.b16 %v670
      %v710 = vunpack.c.l.b16 %v671
      %v711 = vunpack.c.l.b16 %v672
      %v712 = vunpack.c.l.b16 %v673
      %v713 = vunpack.c.l.b16 %v674
      %v714 = vunpack.c.l.b16 %v675
      %v715 = vunpack.c.l.b16 %v676
      %v716 = vpack.c.b16 %v701, %v700
      %v717 = vpack.c.b16 %v703, %v702
      %v718 = vpack.c.b16 %v705, %v704
      %v719 = vpack.c.b16 %v707, %v706
      %v720 = vpack.c.b16 %v709, %v708
      %v721 = vpack.c.b16 %v711, %v710
      %v722 = vpack.c.b16 %v713, %v712
      %v723 = vpack.c.b16 %v715, %v714
      %732 = vmatprep.subr.bf16.mxu0 0
      %733 = vmatpush1.bf16.msra.mxu0 %v723
      %734 = vmatprep.subr.bf16.mxu0 0
      %735 = vmatpush1.bf16.msra.mxu0 %v722
      %736 = vmatprep.subr.bf16.mxu0 0
      %737 = vmatpush1.bf16.msra.mxu0 %v721
      %738 = vmatprep.subr.bf16.mxu0 0
      %739 = vmatpush1.bf16.msra.mxu0 %v720
      %740 = vmatprep.subr.bf16.mxu0 0
      %741 = vmatpush1.bf16.msra.mxu0 %v719
      %742 = vmatprep.subr.bf16.mxu0 0
      %743 = vmatpush1.bf16.msra.mxu0 %v718
      %744 = vmatprep.subr.bf16.mxu0 0
      %745 = vmatpush1.bf16.msra.mxu0 %v717
      %746 = vmatprep.subr.bf16.mxu0 0
      %747 = vmatpush1.bf16.msra.mxu0 %v716
      %748 = vmatprep.subr.bf16.mxu0 0
      %749 = vmatpush2.bf16.msra.mxu0 0
      %750 = vmatprep.subr.bf16.mxu0 0
      %751 = vmatpush2.bf16.msra.mxu0 0
      %752 = vmatprep.subr.bf16.mxu0 0
      %753 = vmatpush2.bf16.msra.mxu0 0
      %754 = vmatprep.subr.bf16.mxu0 0
      %755 = vmatpush2.bf16.msra.mxu0 0
      %756 = vmatprep.subr.bf16.mxu0 0
      %757 = vmatpush2.bf16.msra.mxu0 0
      %758 = vmatprep.subr.bf16.mxu0 0
      %759 = vmatpush2.bf16.msra.mxu0 0
      %760 = vmatprep.subr.bf16.mxu0 0
      %761 = vmatpush2.bf16.msra.mxu0 0
      %762 = vmatprep.subr.bf16.mxu0 0
      %763 = vmatpush2.bf16.msra.mxu0 0
      %764 = vmatprep.mubr.bf16.mxu0 0
      %765 = vmatmul.mubr.bf16.gmra.mxu0 %v653
      %v766 = vpop.f32.mrf.mxu0
      %v767 = vadd.f32 %v682, %v766
      %v768 = vpop.f32.mrf.mxu0
      %v769 = vpop.f32.mrf.mxu0
      %v770 = vadd.f32 %v682, %v769
      %v771 = vpop.f32.mrf.mxu0
      %772 = vmatprep.mubr.bf16.mxu0 0
      %773 = vmatmul.mubr.bf16.gmra.mxu0 %v654
      %v774 = vpop.f32.mrf.mxu0
      %v775 = vadd.f32 %v682, %v774
      %v776 = vpop.f32.mrf.mxu0
      %v777 = vpop.f32.mrf.mxu0
      %v778 = vadd.f32 %v682, %v777
      %v779 = vpop.f32.mrf.mxu0
      %780 = vmatprep.mubr.bf16.mxu0 0
      %781 = vmatmul.mubr.bf16.gmra.mxu0 %v655
      %v782 = vpop.f32.mrf.mxu0
      %v783 = vadd.f32 %v682, %v782
      %v784 = vpop.f32.mrf.mxu0
      %v785 = vpop.f32.mrf.mxu0
      %v786 = vadd.f32 %v682, %v785
      %v787 = vpop.f32.mrf.mxu0
      %788 = vmatprep.mubr.bf16.mxu0 0
      %789 = vmatmul.mubr.bf16.gmra.mxu0 %v656
      %v790 = vpop.f32.mrf.mxu0
      %v791 = vadd.f32 %v682, %v790
      %v792 = vpop.f32.mrf.mxu0
      %v793 = vpop.f32.mrf.mxu0
      %v794 = vadd.f32 %v682, %v793
      %v795 = vpop.f32.mrf.mxu0
      %796 = vmatprep.mubr.bf16.mxu0 0
      %797 = vmatmul.mubr.bf16.gmra.mxu0 %v657
      %v798 = vpop.f32.mrf.mxu0
      %v799 = vadd.f32 %v682, %v798
      %v800 = vpop.f32.mrf.mxu0
      %v801 = vpop.f32.mrf.mxu0
      %v802 = vadd.f32 %v682, %v801
      %v803 = vpop.f32.mrf.mxu0
      %804 = vmatprep.mubr.bf16.mxu0 0
      %805 = vmatmul.mubr.bf16.gmra.mxu0 %v658
      %v806 = vpop.f32.mrf.mxu0
      %v807 = vadd.f32 %v682, %v806
      %v808 = vpop.f32.mrf.mxu0
      %v809 = vpop.f32.mrf.mxu0
      %v810 = vadd.f32 %v682, %v809
      %v811 = vpop.f32.mrf.mxu0
      %812 = vmatprep.mubr.bf16.mxu0 0
      %813 = vmatmul.mubr.bf16.gmra.mxu0 %v659
      %v814 = vpop.f32.mrf.mxu0
      %v815 = vadd.f32 %v682, %v814
      %v816 = vpop.f32.mrf.mxu0
      %v817 = vpop.f32.mrf.mxu0
      %v818 = vadd.f32 %v682, %v817
      %v819 = vpop.f32.mrf.mxu0
      %820 = vmatprep.mubr.bf16.mxu0 0
      %821 = vmatmul.mubr.bf16.gmra.mxu0 %v660
      %v822 = vpop.f32.mrf.mxu0
      %v823 = vadd.f32 %v682, %v822
      %v824 = vpop.f32.mrf.mxu0
      %v825 = vpop.f32.mrf.mxu0
      %v826 = vadd.f32 %v682, %v825
      %v827 = vpop.f32.mrf.mxu0
      %828 = vdwg.mxu0
      %v829 = vmax.f32 %v767, 0.0
      %v830 = vmax.f32 %v770, 0.0
      %v831 = vmax.f32 %v775, 0.0
      %v832 = vmax.f32 %v778, 0.0
      %v833 = vmax.f32 %v783, 0.0
      %v834 = vmax.f32 %v786, 0.0
      %v835 = vmax.f32 %v791, 0.0
      %v836 = vmax.f32 %v794, 0.0
      %v837 = vmax.f32 %v799, 0.0
      %v838 = vmax.f32 %v802, 0.0
      %v839 = vmax.f32 %v807, 0.0
      %v840 = vmax.f32 %v810, 0.0
      %v841 = vmax.f32 %v815, 0.0
      %v842 = vmax.f32 %v818, 0.0
      %v843 = vmax.f32 %v823, 0.0
      %v844 = vmax.f32 %v826, 0.0
      %v845 = vpack.c.bf16 %v830, %v829
      %v846 = vpack.c.bf16 %v832, %v831
      %v847 = vpack.c.bf16 %v834, %v833
      %v848 = vpack.c.bf16 %v836, %v835
      %v849 = vpack.c.bf16 %v838, %v837
      %v850 = vpack.c.bf16 %v840, %v839
      %v851 = vpack.c.bf16 %v842, %v841
      %v852 = vpack.c.bf16 %v844, %v843
      %v853 = vld [vmem:[%s3] sm:$0xf]
      %v854 = vld [vmem:[%s3 + $0x4] sm:$0xf]
      %v855 = vld [vmem:[%s3 + $0x8] sm:$0xf]
      %v856 = vld [vmem:[%s3 + $0xc] sm:$0xf]
      %v857 = vld [vmem:[%s3 + $0x10] sm:$0xf]
      %v858 = vld [vmem:[%s3 + $0x14] sm:$0xf]
      %v859 = vld [vmem:[%s3 + $0x18] sm:$0xf]
      %v860 = vld [vmem:[%s3 + $0x1c] sm:$0xf]
      %v861 = vld [vmem:[%s3 + $0x20] sm:$0xf]
      %v862 = vld [vmem:[%s3 + $0x24] sm:$0xf]
      %v863 = vld [vmem:[%s3 + $0x28] sm:$0xf]
      %v864 = vld [vmem:[%s3 + $0x2c] sm:$0xf]
      %v865 = vld [vmem:[%s3 + $0x30] sm:$0xf]
      %v866 = vld [vmem:[%s3 + $0x34] sm:$0xf]
      %v867 = vld [vmem:[%s3 + $0x38] sm:$0xf]
      %v868 = vld [vmem:[%s3 + $0x3c] sm:$0xf]
      %v869 = vld [vmem:[%s9] sm:$0x1]
      %v871 = vlaneseq
      %v872 = vshrl.u32 %v871, 7
      %v873 = vsub.s32 0, %v872
      %v874 = vrot.slane %v869, %v873
      %v892 = vunpack.c.l.b16 %v853
      %v893 = vunpack.c.l.b16 %v854
      %v894 = vunpack.c.l.b16 %v855
      %v895 = vunpack.c.l.b16 %v856
      %v896 = vunpack.c.l.b16 %v857
      %v897 = vunpack.c.l.b16 %v858
      %v898 = vunpack.c.l.b16 %v859
      %v899 = vunpack.c.l.b16 %v860
      %v900 = vunpack.c.l.b16 %v861
      %v901 = vunpack.c.l.b16 %v862
      %v902 = vunpack.c.l.b16 %v863
      %v903 = vunpack.c.l.b16 %v864
      %v904 = vunpack.c.l.b16 %v865
      %v905 = vunpack.c.l.b16 %v866
      %v906 = vunpack.c.l.b16 %v867
      %v907 = vunpack.c.l.b16 %v868
      %v908 = vpack.c.b16 %v893, %v892
      %v909 = vpack.c.b16 %v895, %v894
      %v910 = vpack.c.b16 %v897, %v896
      %v911 = vpack.c.b16 %v899, %v898
      %v912 = vpack.c.b16 %v901, %v900
      %v913 = vpack.c.b16 %v903, %v902
      %v914 = vpack.c.b16 %v905, %v904
      %v915 = vpack.c.b16 %v907, %v906
      %924 = vmatprep.subr.bf16.mxu0 0
      %925 = vmatpush1.bf16.msra.mxu0 %v915
      %926 = vmatprep.subr.bf16.mxu0 0
      %927 = vmatpush1.bf16.msra.mxu0 %v914
      %928 = vmatprep.subr.bf16.mxu0 0
      %929 = vmatpush1.bf16.msra.mxu0 %v913
      %930 = vmatprep.subr.bf16.mxu0 0
      %931 = vmatpush1.bf16.msra.mxu0 %v912
      %932 = vmatprep.subr.bf16.mxu0 0
      %933 = vmatpush1.bf16.msra.mxu0 %v911
      %934 = vmatprep.subr.bf16.mxu0 0
      %935 = vmatpush1.bf16.msra.mxu0 %v910
      %936 = vmatprep.subr.bf16.mxu0 0
      %937 = vmatpush1.bf16.msra.mxu0 %v909
      %938 = vmatprep.subr.bf16.mxu0 0
      %939 = vmatpush1.bf16.msra.mxu0 %v908
      %940 = vmatprep.subr.bf16.mxu0 0
      %941 = vmatpush2.bf16.msra.mxu0 0
      %942 = vmatprep.subr.bf16.mxu0 0
      %943 = vmatpush2.bf16.msra.mxu0 0
      %944 = vmatprep.subr.bf16.mxu0 0
      %945 = vmatpush2.bf16.msra.mxu0 0
      %946 = vmatprep.subr.bf16.mxu0 0
      %947 = vmatpush2.bf16.msra.mxu0 0
      %948 = vmatprep.subr.bf16.mxu0 0
      %949 = vmatpush2.bf16.msra.mxu0 0
      %950 = vmatprep.subr.bf16.mxu0 0
      %951 = vmatpush2.bf16.msra.mxu0 0
      %952 = vmatprep.subr.bf16.mxu0 0
      %953 = vmatpush2.bf16.msra.mxu0 0
      %954 = vmatprep.subr.bf16.mxu0 0
      %955 = vmatpush2.bf16.msra.mxu0 0
      %956 = vmatprep.mubr.bf16.mxu0 0
      %957 = vmatmul.mubr.bf16.gmra.mxu0 %v845
      %v958 = vpop.f32.mrf.mxu0
      %v959 = vadd.f32 %v874, %v958
      %v960 = vpop.f32.mrf.mxu0
      %v961 = vpop.f32.mrf.mxu0
      %v962 = vadd.f32 %v874, %v961
      %v963 = vpop.f32.mrf.mxu0
      %964 = vmatprep.mubr.bf16.mxu0 0
      %965 = vmatmul.mubr.bf16.gmra.mxu0 %v846
      %v966 = vpop.f32.mrf.mxu0
      %v967 = vadd.f32 %v874, %v966
      %v968 = vpop.f32.mrf.mxu0
      %v969 = vpop.f32.mrf.mxu0
      %v970 = vadd.f32 %v874, %v969
      %v971 = vpop.f32.mrf.mxu0
      %972 = vmatprep.mubr.bf16.mxu0 0
      %973 = vmatmul.mubr.bf16.gmra.mxu0 %v847
      %v974 = vpop.f32.mrf.mxu0
      %v975 = vadd.f32 %v874, %v974
      %v976 = vpop.f32.mrf.mxu0
      %v977 = vpop.f32.mrf.mxu0
      %v978 = vadd.f32 %v874, %v977
      %v979 = vpop.f32.mrf.mxu0
      %980 = vmatprep.mubr.bf16.mxu0 0
      %981 = vmatmul.mubr.bf16.gmra.mxu0 %v848
      %v982 = vpop.f32.mrf.mxu0
      %v983 = vadd.f32 %v874, %v982
      %v984 = vpop.f32.mrf.mxu0
      %v985 = vpop.f32.mrf.mxu0
      %v986 = vadd.f32 %v874, %v985
      %v987 = vpop.f32.mrf.mxu0
      %988 = vmatprep.mubr.bf16.mxu0 0
      %989 = vmatmul.mubr.bf16.gmra.mxu0 %v849
      %v990 = vpop.f32.mrf.mxu0
      %v991 = vadd.f32 %v874, %v990
      %v992 = vpop.f32.mrf.mxu0
      %v993 = vpop.f32.mrf.mxu0
      %v994 = vadd.f32 %v874, %v993
      %v995 = vpop.f32.mrf.mxu0
      %996 = vmatprep.mubr.bf16.mxu0 0
      %997 = vmatmul.mubr.bf16.gmra.mxu0 %v850
      %v998 = vpop.f32.mrf.mxu0
      %v999 = vadd.f32 %v874, %v998
      %v1000 = vpop.f32.mrf.mxu0
      %v1001 = vpop.f32.mrf.mxu0
      %v1002 = vadd.f32 %v874, %v1001
      %v1003 = vpop.f32.mrf.mxu0
      %1004 = vmatprep.mubr.bf16.mxu0 0
      %1005 = vmatmul.mubr.bf16.gmra.mxu0 %v851
      %v1006 = vpop.f32.mrf.mxu0
      %v1007 = vadd.f32 %v874, %v1006
      %v1008 = vpop.f32.mrf.mxu0
      %v1009 = vpop.f32.mrf.mxu0
      %v1010 = vadd.f32 %v874, %v1009
      %v1011 = vpop.f32.mrf.mxu0
      %1012 = vmatprep.mubr.bf16.mxu0 0
      %1013 = vmatmul.mubr.bf16.gmra.mxu0 %v852
      %v1014 = vpop.f32.mrf.mxu0
      %v1015 = vadd.f32 %v874, %v1014
      %v1016 = vpop.f32.mrf.mxu0
      %v1017 = vpop.f32.mrf.mxu0
      %v1018 = vadd.f32 %v874, %v1017
      %v1019 = vpop.f32.mrf.mxu0
      %1020 = vdwg.mxu0
      %v1021 = vsub.f32 0.0, %v959
      %v1022 = vsub.f32 0.0, %v962
      %v1023 = vsub.f32 0.0, %v967
      %v1024 = vsub.f32 0.0, %v970
      %v1025 = vsub.f32 0.0, %v975
      %v1026 = vsub.f32 0.0, %v978
      %v1027 = vsub.f32 0.0, %v983
      %v1028 = vsub.f32 0.0, %v986
      %v1029 = vsub.f32 0.0, %v991
      %v1030 = vsub.f32 0.0, %v994
      %v1031 = vsub.f32 0.0, %v999
      %v1032 = vsub.f32 0.0, %v1002
      %v1033 = vsub.f32 0.0, %v1007
      %v1034 = vsub.f32 0.0, %v1010
      %v1035 = vsub.f32 0.0, %v1015
      %v1036 = vsub.f32 0.0, %v1018
      %v1037 = vmul.f32 %v1021, 1.442695
      %v1038 = vpow.pop %v1037
      %v1039 = vmul.f32 %v1022, 1.442695
      %v1040 = vpow.pop %v1039
      %v1041 = vmul.f32 %v1023, 1.442695
      %v1042 = vpow.pop %v1041
      %v1043 = vmul.f32 %v1024, 1.442695
      %v1044 = vpow.pop %v1043
      %v1045 = vmul.f32 %v1025, 1.442695
      %v1046 = vpow.pop %v1045
      %v1047 = vmul.f32 %v1026, 1.442695
      %v1048 = vpow.pop %v1047
      %v1049 = vmul.f32 %v1027, 1.442695
      %v1050 = vpow.pop %v1049
      %v1051 = vmul.f32 %v1028, 1.442695
      %v1052 = vpow.pop %v1051
      %v1053 = vmul.f32 %v1029, 1.442695
      %v1054 = vpow.pop %v1053
      %v1055 = vmul.f32 %v1030, 1.442695
      %v1056 = vpow.pop %v1055
      %v1057 = vmul.f32 %v1031, 1.442695
      %v1058 = vpow.pop %v1057
      %v1059 = vmul.f32 %v1032, 1.442695
      %v1060 = vpow.pop %v1059
      %v1061 = vmul.f32 %v1033, 1.442695
      %v1062 = vpow.pop %v1061
      %v1063 = vmul.f32 %v1034, 1.442695
      %v1064 = vpow.pop %v1063
      %v1065 = vmul.f32 %v1035, 1.442695
      %v1066 = vpow.pop %v1065
      %v1067 = vmul.f32 %v1036, 1.442695
      %v1068 = vpow.pop %v1067
      %v1069 = vadd.f32 %v1038, 1.0
      %v1070 = vadd.f32 %v1040, 1.0
      %v1071 = vadd.f32 %v1042, 1.0
      %v1072 = vadd.f32 %v1044, 1.0
      %v1073 = vadd.f32 %v1046, 1.0
      %v1074 = vadd.f32 %v1048, 1.0
      %v1075 = vadd.f32 %v1050, 1.0
      %v1076 = vadd.f32 %v1052, 1.0
      %v1077 = vadd.f32 %v1054, 1.0
      %v1078 = vadd.f32 %v1056, 1.0
      %v1079 = vadd.f32 %v1058, 1.0
      %v1080 = vadd.f32 %v1060, 1.0
      %v1081 = vadd.f32 %v1062, 1.0
      %v1082 = vadd.f32 %v1064, 1.0
      %v1083 = vadd.f32 %v1066, 1.0
      %v1084 = vadd.f32 %v1068, 1.0
      %v1085 = vrcp.pop %v1069
      %v1086 = vrcp.pop %v1070
      %v1087 = vrcp.pop %v1071
      %v1088 = vrcp.pop %v1072
      %v1089 = vrcp.pop %v1073
      %v1090 = vrcp.pop %v1074
      %v1091 = vrcp.pop %v1075
      %v1092 = vrcp.pop %v1076
      %v1093 = vrcp.pop %v1077
      %v1094 = vrcp.pop %v1078
      %v1095 = vrcp.pop %v1079
      %v1096 = vrcp.pop %v1080
      %v1097 = vrcp.pop %v1081
      %v1098 = vrcp.pop %v1082
      %v1099 = vrcp.pop %v1083
      %v1100 = vrcp.pop %v1084
      %v1101 = vpack.c.bf16 %v1086, %v1085
      %v1102 = vpack.c.bf16 %v1088, %v1087
      %v1103 = vpack.c.bf16 %v1090, %v1089
      %v1104 = vpack.c.bf16 %v1092, %v1091
      %v1105 = vpack.c.bf16 %v1094, %v1093
      %v1106 = vpack.c.bf16 %v1096, %v1095
      %v1107 = vpack.c.bf16 %v1098, %v1097
      %v1108 = vpack.c.bf16 %v1100, %v1099
      %v1109 = vld [vmem:[%s4] sm:$0xf]
      %v1110 = vld [vmem:[%s4 + $0x4] sm:$0xf]
      %v1111 = vld [vmem:[%s4 + $0x8] sm:$0xf]
      %v1112 = vld [vmem:[%s4 + $0xc] sm:$0xf]
      %v1113 = vld [vmem:[%s4 + $0x10] sm:$0xf]
      %v1114 = vld [vmem:[%s4 + $0x14] sm:$0xf]
      %v1115 = vld [vmem:[%s4 + $0x18] sm:$0xf]
      %v1116 = vld [vmem:[%s4 + $0x1c] sm:$0xf]
      %v1117 = vld [vmem:[%s4 + $0x20] sm:$0xf]
      %v1118 = vld [vmem:[%s4 + $0x24] sm:$0xf]
      %v1119 = vld [vmem:[%s4 + $0x28] sm:$0xf]
      %v1120 = vld [vmem:[%s4 + $0x2c] sm:$0xf]
      %v1121 = vld [vmem:[%s4 + $0x30] sm:$0xf]
      %v1122 = vld [vmem:[%s4 + $0x34] sm:$0xf]
      %v1123 = vld [vmem:[%s4 + $0x38] sm:$0xf]
      %v1124 = vld [vmem:[%s4 + $0x3c] sm:$0xf]
      %v1125 = vld [vmem:[%s10] sm:$0x1]
      %v1127 = vlaneseq
      %v1128 = vshrl.u32 %v1127, 7
      %v1129 = vsub.s32 0, %v1128
      %v1130 = vrot.slane %v1125, %v1129
      %v1148 = vunpack.c.l.b16 %v1109
      %v1149 = vunpack.c.l.b16 %v1110
      %v1150 = vunpack.c.l.b16 %v1111
      %v1151 = vunpack.c.l.b16 %v1112
      %v1152 = vunpack.c.l.b16 %v1113
      %v1153 = vunpack.c.l.b16 %v1114
      %v1154 = vunpack.c.l.b16 %v1115
      %v1155 = vunpack.c.l.b16 %v1116
      %v1156 = vunpack.c.l.b16 %v1117
      %v1157 = vunpack.c.l.b16 %v1118
      %v1158 = vunpack.c.l.b16 %v1119
      %v1159 = vunpack.c.l.b16 %v1120
      %v1160 = vunpack.c.l.b16 %v1121
      %v1161 = vunpack.c.l.b16 %v1122
      %v1162 = vunpack.c.l.b16 %v1123
      %v1163 = vunpack.c.l.b16 %v1124
      %v1164 = vpack.c.b16 %v1149, %v1148
      %v1165 = vpack.c.b16 %v1151, %v1150
      %v1166 = vpack.c.b16 %v1153, %v1152
      %v1167 = vpack.c.b16 %v1155, %v1154
      %v1168 = vpack.c.b16 %v1157, %v1156
      %v1169 = vpack.c.b16 %v1159, %v1158
      %v1170 = vpack.c.b16 %v1161, %v1160
      %v1171 = vpack.c.b16 %v1163, %v1162
      %1180 = vmatprep.subr.bf16.mxu0 0
      %1181 = vmatpush1.bf16.msra.mxu0 %v1171
      %1182 = vmatprep.subr.bf16.mxu0 0
      %1183 = vmatpush1.bf16.msra.mxu0 %v1170
      %1184 = vmatprep.subr.bf16.mxu0 0
      %1185 = vmatpush1.bf16.msra.mxu0 %v1169
      %1186 = vmatprep.subr.bf16.mxu0 0
      %1187 = vmatpush1.bf16.msra.mxu0 %v1168
      %1188 = vmatprep.subr.bf16.mxu0 0
      %1189 = vmatpush1.bf16.msra.mxu0 %v1167
      %1190 = vmatprep.subr.bf16.mxu0 0
      %1191 = vmatpush1.bf16.msra.mxu0 %v1166
      %1192 = vmatprep.subr.bf16.mxu0 0
      %1193 = vmatpush1.bf16.msra.mxu0 %v1165
      %1194 = vmatprep.subr.bf16.mxu0 0
      %1195 = vmatpush1.bf16.msra.mxu0 %v1164
      %1196 = vmatprep.subr.bf16.mxu0 0
      %1197 = vmatpush2.bf16.msra.mxu0 0
      %1198 = vmatprep.subr.bf16.mxu0 0
      %1199 = vmatpush2.bf16.msra.mxu0 0
      %1200 = vmatprep.subr.bf16.mxu0 0
      %1201 = vmatpush2.bf16.msra.mxu0 0
      %1202 = vmatprep.subr.bf16.mxu0 0
      %1203 = vmatpush2.bf16.msra.mxu0 0
      %1204 = vmatprep.subr.bf16.mxu0 0
      %1205 = vmatpush2.bf16.msra.mxu0 0
      %1206 = vmatprep.subr.bf16.mxu0 0
      %1207 = vmatpush2.bf16.msra.mxu0 0
      %1208 = vmatprep.subr.bf16.mxu0 0
      %1209 = vmatpush2.bf16.msra.mxu0 0
      %1210 = vmatprep.subr.bf16.mxu0 0
      %1211 = vmatpush2.bf16.msra.mxu0 0
      %1212 = vmatprep.mubr.bf16.mxu0 0
      %1213 = vmatmul.mubr.bf16.gmra.mxu0 %v1101
      %v1214 = vpop.f32.mrf.mxu0
      %v1215 = vadd.f32 %v1130, %v1214
      %v1216 = vpop.f32.mrf.mxu0
      %v1217 = vpop.f32.mrf.mxu0
      %v1218 = vadd.f32 %v1130, %v1217
      %v1219 = vpop.f32.mrf.mxu0
      %1220 = vmatprep.mubr.bf16.mxu0 0
      %1221 = vmatmul.mubr.bf16.gmra.mxu0 %v1102
      %v1222 = vpop.f32.mrf.mxu0
      %v1223 = vadd.f32 %v1130, %v1222
      %v1224 = vpop.f32.mrf.mxu0
      %v1225 = vpop.f32.mrf.mxu0
      %v1226 = vadd.f32 %v1130, %v1225
      %v1227 = vpop.f32.mrf.mxu0
      %1228 = vmatprep.mubr.bf16.mxu0 0
      %1229 = vmatmul.mubr.bf16.gmra.mxu0 %v1103
      %v1230 = vpop.f32.mrf.mxu0
      %v1231 = vadd.f32 %v1130, %v1230
      %v1232 = vpop.f32.mrf.mxu0
      %v1233 = vpop.f32.mrf.mxu0
      %v1234 = vadd.f32 %v1130, %v1233
      %v1235 = vpop.f32.mrf.mxu0
      %1236 = vmatprep.mubr.bf16.mxu0 0
      %1237 = vmatmul.mubr.bf16.gmra.mxu0 %v1104
      %v1238 = vpop.f32.mrf.mxu0
      %v1239 = vadd.f32 %v1130, %v1238
      %v1240 = vpop.f32.mrf.mxu0
      %v1241 = vpop.f32.mrf.mxu0
      %v1242 = vadd.f32 %v1130, %v1241
      %v1243 = vpop.f32.mrf.mxu0
      %1244 = vmatprep.mubr.bf16.mxu0 0
      %1245 = vmatmul.mubr.bf16.gmra.mxu0 %v1105
      %v1246 = vpop.f32.mrf.mxu0
      %v1247 = vadd.f32 %v1130, %v1246
      %v1248 = vpop.f32.mrf.mxu0
      %v1249 = vpop.f32.mrf.mxu0
      %v1250 = vadd.f32 %v1130, %v1249
      %v1251 = vpop.f32.mrf.mxu0
      %1252 = vmatprep.mubr.bf16.mxu0 0
      %1253 = vmatmul.mubr.bf16.gmra.mxu0 %v1106
      %v1254 = vpop.f32.mrf.mxu0
      %v1255 = vadd.f32 %v1130, %v1254
      %v1256 = vpop.f32.mrf.mxu0
      %v1257 = vpop.f32.mrf.mxu0
      %v1258 = vadd.f32 %v1130, %v1257
      %v1259 = vpop.f32.mrf.mxu0
      %1260 = vmatprep.mubr.bf16.mxu0 0
      %1261 = vmatmul.mubr.bf16.gmra.mxu0 %v1107
      %v1262 = vpop.f32.mrf.mxu0
      %v1263 = vadd.f32 %v1130, %v1262
      %v1264 = vpop.f32.mrf.mxu0
      %v1265 = vpop.f32.mrf.mxu0
      %v1266 = vadd.f32 %v1130, %v1265
      %v1267 = vpop.f32.mrf.mxu0
      %1268 = vmatprep.mubr.bf16.mxu0 0
      %1269 = vmatmul.mubr.bf16.gmra.mxu0 %v1108
      %v1270 = vpop.f32.mrf.mxu0
      %v1271 = vadd.f32 %v1130, %v1270
      %v1272 = vpop.f32.mrf.mxu0
      %v1273 = vpop.f32.mrf.mxu0
      %v1274 = vadd.f32 %v1130, %v1273
      %v1275 = vpop.f32.mrf.mxu0
      %1276 = vdwg.mxu0
      %v1277 = vmax.f32 %v1215, 0.0
      %v1278 = vmax.f32 %v1218, 0.0
      %v1279 = vmax.f32 %v1223, 0.0
      %v1280 = vmax.f32 %v1226, 0.0
      %v1281 = vmax.f32 %v1231, 0.0
      %v1282 = vmax.f32 %v1234, 0.0
      %v1283 = vmax.f32 %v1239, 0.0
      %v1284 = vmax.f32 %v1242, 0.0
      %v1285 = vmax.f32 %v1247, 0.0
      %v1286 = vmax.f32 %v1250, 0.0
      %v1287 = vmax.f32 %v1255, 0.0
      %v1288 = vmax.f32 %v1258, 0.0
      %v1289 = vmax.f32 %v1263, 0.0
      %v1290 = vmax.f32 %v1266, 0.0
      %v1291 = vmax.f32 %v1271, 0.0
      %v1292 = vmax.f32 %v1274, 0.0
      %v1293 = vpack.c.bf16 %v1278, %v1277
      %v1294 = vpack.c.bf16 %v1280, %v1279
      %v1295 = vpack.c.bf16 %v1282, %v1281
      %v1296 = vpack.c.bf16 %v1284, %v1283
      %v1297 = vpack.c.bf16 %v1286, %v1285
      %v1298 = vpack.c.bf16 %v1288, %v1287
      %v1299 = vpack.c.bf16 %v1290, %v1289
      %v1300 = vpack.c.bf16 %v1292, %v1291
      %v1301 = vld [vmem:[%s5] sm:$0xf]
      %v1302 = vld [vmem:[%s5 + $0x4] sm:$0xf]
      %v1303 = vld [vmem:[%s5 + $0x8] sm:$0xf]
      %v1304 = vld [vmem:[%s5 + $0xc] sm:$0xf]
      %v1305 = vld [vmem:[%s5 + $0x10] sm:$0xf]
      %v1306 = vld [vmem:[%s5 + $0x14] sm:$0xf]
      %v1307 = vld [vmem:[%s5 + $0x18] sm:$0xf]
      %v1308 = vld [vmem:[%s5 + $0x1c] sm:$0xf]
      %v1309 = vld [vmem:[%s5 + $0x20] sm:$0xf]
      %v1310 = vld [vmem:[%s5 + $0x24] sm:$0xf]
      %v1311 = vld [vmem:[%s5 + $0x28] sm:$0xf]
      %v1312 = vld [vmem:[%s5 + $0x2c] sm:$0xf]
      %v1313 = vld [vmem:[%s5 + $0x30] sm:$0xf]
      %v1314 = vld [vmem:[%s5 + $0x34] sm:$0xf]
      %v1315 = vld [vmem:[%s5 + $0x38] sm:$0xf]
      %v1316 = vld [vmem:[%s5 + $0x3c] sm:$0xf]
      %v1317 = vld [vmem:[%s11] sm:$0x1]
      %v1319 = vlaneseq
      %v1320 = vshrl.u32 %v1319, 7
      %v1321 = vsub.s32 0, %v1320
      %v1322 = vrot.slane %v1317, %v1321
      %v1340 = vunpack.c.l.b16 %v1301
      %v1341 = vunpack.c.l.b16 %v1302
      %v1342 = vunpack.c.l.b16 %v1303
      %v1343 = vunpack.c.l.b16 %v1304
      %v1344 = vunpack.c.l.b16 %v1305
      %v1345 = vunpack.c.l.b16 %v1306
      %v1346 = vunpack.c.l.b16 %v1307
      %v1347 = vunpack.c.l.b16 %v1308
      %v1348 = vunpack.c.l.b16 %v1309
      %v1349 = vunpack.c.l.b16 %v1310
      %v1350 = vunpack.c.l.b16 %v1311
      %v1351 = vunpack.c.l.b16 %v1312
      %v1352 = vunpack.c.l.b16 %v1313
      %v1353 = vunpack.c.l.b16 %v1314
      %v1354 = vunpack.c.l.b16 %v1315
      %v1355 = vunpack.c.l.b16 %v1316
      %v1356 = vpack.c.b16 %v1341, %v1340
      %v1357 = vpack.c.b16 %v1343, %v1342
      %v1358 = vpack.c.b16 %v1345, %v1344
      %v1359 = vpack.c.b16 %v1347, %v1346
      %v1360 = vpack.c.b16 %v1349, %v1348
      %v1361 = vpack.c.b16 %v1351, %v1350
      %v1362 = vpack.c.b16 %v1353, %v1352
      %v1363 = vpack.c.b16 %v1355, %v1354
      %1372 = vmatprep.subr.bf16.mxu0 0
      %1373 = vmatpush1.bf16.msra.mxu0 %v1363
      %1374 = vmatprep.subr.bf16.mxu0 0
      %1375 = vmatpush1.bf16.msra.mxu0 %v1362
      %1376 = vmatprep.subr.bf16.mxu0 0
      %1377 = vmatpush1.bf16.msra.mxu0 %v1361
      %1378 = vmatprep.subr.bf16.mxu0 0
      %1379 = vmatpush1.bf16.msra.mxu0 %v1360
      %1380 = vmatprep.subr.bf16.mxu0 0
      %1381 = vmatpush1.bf16.msra.mxu0 %v1359
      %1382 = vmatprep.subr.bf16.mxu0 0
      %1383 = vmatpush1.bf16.msra.mxu0 %v1358
      %1384 = vmatprep.subr.bf16.mxu0 0
      %1385 = vmatpush1.bf16.msra.mxu0 %v1357
      %1386 = vmatprep.subr.bf16.mxu0 0
      %1387 = vmatpush1.bf16.msra.mxu0 %v1356
      %1388 = vmatprep.subr.bf16.mxu0 0
      %1389 = vmatpush2.bf16.msra.mxu0 0
      %1390 = vmatprep.subr.bf16.mxu0 0
      %1391 = vmatpush2.bf16.msra.mxu0 0
      %1392 = vmatprep.subr.bf16.mxu0 0
      %1393 = vmatpush2.bf16.msra.mxu0 0
      %1394 = vmatprep.subr.bf16.mxu0 0
      %1395 = vmatpush2.bf16.msra.mxu0 0
      %1396 = vmatprep.subr.bf16.mxu0 0
      %1397 = vmatpush2.bf16.msra.mxu0 0
      %1398 = vmatprep.subr.bf16.mxu0 0
      %1399 = vmatpush2.bf16.msra.mxu0 0
      %1400 = vmatprep.subr.bf16.mxu0 0
      %1401 = vmatpush2.bf16.msra.mxu0 0
      %1402 = vmatprep.subr.bf16.mxu0 0
      %1403 = vmatpush2.bf16.msra.mxu0 0
      %1404 = vmatprep.mubr.bf16.mxu0 0
      %1405 = vmatmul.mubr.bf16.gmra.mxu0 %v1293
      %v1406 = vpop.f32.mrf.mxu0
      %v1407 = vadd.f32 %v1322, %v1406
      %v1408 = vpop.f32.mrf.mxu0
      %v1409 = vpop.f32.mrf.mxu0
      %v1410 = vadd.f32 %v1322, %v1409
      %v1411 = vpop.f32.mrf.mxu0
      %1412 = vmatprep.mubr.bf16.mxu0 0
      %1413 = vmatmul.mubr.bf16.gmra.mxu0 %v1294
      %v1414 = vpop.f32.mrf.mxu0
      %v1415 = vadd.f32 %v1322, %v1414
      %v1416 = vpop.f32.mrf.mxu0
      %v1417 = vpop.f32.mrf.mxu0
      %v1418 = vadd.f32 %v1322, %v1417
      %v1419 = vpop.f32.mrf.mxu0
      %1420 = vmatprep.mubr.bf16.mxu0 0
      %1421 = vmatmul.mubr.bf16.gmra.mxu0 %v1295
      %v1422 = vpop.f32.mrf.mxu0
      %v1423 = vadd.f32 %v1322, %v1422
      %v1424 = vpop.f32.mrf.mxu0
      %v1425 = vpop.f32.mrf.mxu0
      %v1426 = vadd.f32 %v1322, %v1425
      %v1427 = vpop.f32.mrf.mxu0
      %1428 = vmatprep.mubr.bf16.mxu0 0
      %1429 = vmatmul.mubr.bf16.gmra.mxu0 %v1296
      %v1430 = vpop.f32.mrf.mxu0
      %v1431 = vadd.f32 %v1322, %v1430
      %v1432 = vpop.f32.mrf.mxu0
      %v1433 = vpop.f32.mrf.mxu0
      %v1434 = vadd.f32 %v1322, %v1433
      %v1435 = vpop.f32.mrf.mxu0
      %1436 = vmatprep.mubr.bf16.mxu0 0
      %1437 = vmatmul.mubr.bf16.gmra.mxu0 %v1297
      %v1438 = vpop.f32.mrf.mxu0
      %v1439 = vadd.f32 %v1322, %v1438
      %v1440 = vpop.f32.mrf.mxu0
      %v1441 = vpop.f32.mrf.mxu0
      %v1442 = vadd.f32 %v1322, %v1441
      %v1443 = vpop.f32.mrf.mxu0
      %1444 = vmatprep.mubr.bf16.mxu0 0
      %1445 = vmatmul.mubr.bf16.gmra.mxu0 %v1298
      %v1446 = vpop.f32.mrf.mxu0
      %v1447 = vadd.f32 %v1322, %v1446
      %v1448 = vpop.f32.mrf.mxu0
      %v1449 = vpop.f32.mrf.mxu0
      %v1450 = vadd.f32 %v1322, %v1449
      %v1451 = vpop.f32.mrf.mxu0
      %1452 = vmatprep.mubr.bf16.mxu0 0
      %1453 = vmatmul.mubr.bf16.gmra.mxu0 %v1299
      %v1454 = vpop.f32.mrf.mxu0
      %v1455 = vadd.f32 %v1322, %v1454
      %v1456 = vpop.f32.mrf.mxu0
      %v1457 = vpop.f32.mrf.mxu0
      %v1458 = vadd.f32 %v1322, %v1457
      %v1459 = vpop.f32.mrf.mxu0
      %1460 = vmatprep.mubr.bf16.mxu0 0
      %1461 = vmatmul.mubr.bf16.gmra.mxu0 %v1300
      %v1462 = vpop.f32.mrf.mxu0
      %v1463 = vadd.f32 %v1322, %v1462
      %v1464 = vpop.f32.mrf.mxu0
      %v1465 = vpop.f32.mrf.mxu0
      %v1466 = vadd.f32 %v1322, %v1465
      %v1467 = vpop.f32.mrf.mxu0
      %1468 = vdwg.mxu0
      %v1469 = vmax.f32 %v1407, 0.0
      %v1470 = vmax.f32 %v1410, 0.0
      %v1471 = vmax.f32 %v1415, 0.0
      %v1472 = vmax.f32 %v1418, 0.0
      %v1473 = vmax.f32 %v1423, 0.0
      %v1474 = vmax.f32 %v1426, 0.0
      %v1475 = vmax.f32 %v1431, 0.0
      %v1476 = vmax.f32 %v1434, 0.0
      %v1477 = vmax.f32 %v1439, 0.0
      %v1478 = vmax.f32 %v1442, 0.0
      %v1479 = vmax.f32 %v1447, 0.0
      %v1480 = vmax.f32 %v1450, 0.0
      %v1481 = vmax.f32 %v1455, 0.0
      %v1482 = vmax.f32 %v1458, 0.0
      %v1483 = vmax.f32 %v1463, 0.0
      %v1484 = vmax.f32 %v1466, 0.0
      %v1485 = vpack.c.bf16 %v1470, %v1469
      %v1486 = vpack.c.bf16 %v1472, %v1471
      %v1487 = vpack.c.bf16 %v1474, %v1473
      %v1488 = vpack.c.bf16 %v1476, %v1475
      %v1489 = vpack.c.bf16 %v1478, %v1477
      %v1490 = vpack.c.bf16 %v1480, %v1479
      %v1491 = vpack.c.bf16 %v1482, %v1481
      %v1492 = vpack.c.bf16 %v1484, %v1483
      %v1493 = vld [vmem:[%s6] sm:$0xf]
      %v1494 = vld [vmem:[%s6 + $0x4] sm:$0xf]
      %v1495 = vld [vmem:[%s6 + $0x8] sm:$0xf]
      %v1496 = vld [vmem:[%s6 + $0xc] sm:$0xf]
      %v1497 = vld [vmem:[%s6 + $0x10] sm:$0xf]
      %v1498 = vld [vmem:[%s6 + $0x14] sm:$0xf]
      %v1499 = vld [vmem:[%s6 + $0x18] sm:$0xf]
      %v1500 = vld [vmem:[%s6 + $0x1c] sm:$0xf]
      %v1501 = vld [vmem:[%s6 + $0x20] sm:$0xf]
      %v1502 = vld [vmem:[%s6 + $0x24] sm:$0xf]
      %v1503 = vld [vmem:[%s6 + $0x28] sm:$0xf]
      %v1504 = vld [vmem:[%s6 + $0x2c] sm:$0xf]
      %v1505 = vld [vmem:[%s6 + $0x30] sm:$0xf]
      %v1506 = vld [vmem:[%s6 + $0x34] sm:$0xf]
      %v1507 = vld [vmem:[%s6 + $0x38] sm:$0xf]
      %v1508 = vld [vmem:[%s6 + $0x3c] sm:$0xf]
      %v1509 = vld [vmem:[%s12] sm:$0x1]
      %v1511 = vlaneseq
      %v1512 = vshrl.u32 %v1511, 7
      %v1513 = vsub.s32 0, %v1512
      %v1514 = vrot.slane %v1509, %v1513
      %v1532 = vunpack.c.l.b16 %v1493
      %v1533 = vunpack.c.l.b16 %v1494
      %v1534 = vunpack.c.l.b16 %v1495
      %v1535 = vunpack.c.l.b16 %v1496
      %v1536 = vunpack.c.l.b16 %v1497
      %v1537 = vunpack.c.l.b16 %v1498
      %v1538 = vunpack.c.l.b16 %v1499
      %v1539 = vunpack.c.l.b16 %v1500
      %v1540 = vunpack.c.l.b16 %v1501
      %v1541 = vunpack.c.l.b16 %v1502
      %v1542 = vunpack.c.l.b16 %v1503
      %v1543 = vunpack.c.l.b16 %v1504
      %v1544 = vunpack.c.l.b16 %v1505
      %v1545 = vunpack.c.l.b16 %v1506
      %v1546 = vunpack.c.l.b16 %v1507
      %v1547 = vunpack.c.l.b16 %v1508
      %v1548 = vpack.c.b16 %v1533, %v1532
      %v1549 = vpack.c.b16 %v1535, %v1534
      %v1550 = vpack.c.b16 %v1537, %v1536
      %v1551 = vpack.c.b16 %v1539, %v1538
      %v1552 = vpack.c.b16 %v1541, %v1540
      %v1553 = vpack.c.b16 %v1543, %v1542
      %v1554 = vpack.c.b16 %v1545, %v1544
      %v1555 = vpack.c.b16 %v1547, %v1546
      %1564 = vmatprep.subr.bf16.mxu0 0
      %1565 = vmatpush1.bf16.msra.mxu0 %v1555
      %1566 = vmatprep.subr.bf16.mxu0 0
      %1567 = vmatpush1.bf16.msra.mxu0 %v1554
      %1568 = vmatprep.subr.bf16.mxu0 0
      %1569 = vmatpush1.bf16.msra.mxu0 %v1553
      %1570 = vmatprep.subr.bf16.mxu0 0
      %1571 = vmatpush1.bf16.msra.mxu0 %v1552
      %1572 = vmatprep.subr.bf16.mxu0 0
      %1573 = vmatpush1.bf16.msra.mxu0 %v1551
      %1574 = vmatprep.subr.bf16.mxu0 0
      %1575 = vmatpush1.bf16.msra.mxu0 %v1550
      %1576 = vmatprep.subr.bf16.mxu0 0
      %1577 = vmatpush1.bf16.msra.mxu0 %v1549
      %1578 = vmatprep.subr.bf16.mxu0 0
      %1579 = vmatpush1.bf16.msra.mxu0 %v1548
      %1580 = vmatprep.subr.bf16.mxu0 0
      %1581 = vmatpush2.bf16.msra.mxu0 0
      %1582 = vmatprep.subr.bf16.mxu0 0
      %1583 = vmatpush2.bf16.msra.mxu0 0
      %1584 = vmatprep.subr.bf16.mxu0 0
      %1585 = vmatpush2.bf16.msra.mxu0 0
      %1586 = vmatprep.subr.bf16.mxu0 0
      %1587 = vmatpush2.bf16.msra.mxu0 0
      %1588 = vmatprep.subr.bf16.mxu0 0
      %1589 = vmatpush2.bf16.msra.mxu0 0
      %1590 = vmatprep.subr.bf16.mxu0 0
      %1591 = vmatpush2.bf16.msra.mxu0 0
      %1592 = vmatprep.subr.bf16.mxu0 0
      %1593 = vmatpush2.bf16.msra.mxu0 0
      %1594 = vmatprep.subr.bf16.mxu0 0
      %1595 = vmatpush2.bf16.msra.mxu0 0
      %1596 = vmatprep.mubr.bf16.mxu0 0
      %1597 = vmatmul.mubr.bf16.gmra.mxu0 %v1485
      %v1598 = vpop.f32.mrf.mxu0
      %v1599 = vadd.f32 %v1514, %v1598
      %v1600 = vpop.f32.mrf.mxu0
      %v1601 = vpop.f32.mrf.mxu0
      %v1602 = vadd.f32 %v1514, %v1601
      %v1603 = vpop.f32.mrf.mxu0
      %1604 = vmatprep.mubr.bf16.mxu0 0
      %1605 = vmatmul.mubr.bf16.gmra.mxu0 %v1486
      %v1606 = vpop.f32.mrf.mxu0
      %v1607 = vadd.f32 %v1514, %v1606
      %v1608 = vpop.f32.mrf.mxu0
      %v1609 = vpop.f32.mrf.mxu0
      %v1610 = vadd.f32 %v1514, %v1609
      %v1611 = vpop.f32.mrf.mxu0
      %1612 = vmatprep.mubr.bf16.mxu0 0
      %1613 = vmatmul.mubr.bf16.gmra.mxu0 %v1487
      %v1614 = vpop.f32.mrf.mxu0
      %v1615 = vadd.f32 %v1514, %v1614
      %v1616 = vpop.f32.mrf.mxu0
      %v1617 = vpop.f32.mrf.mxu0
      %v1618 = vadd.f32 %v1514, %v1617
      %v1619 = vpop.f32.mrf.mxu0
      %1620 = vmatprep.mubr.bf16.mxu0 0
      %1621 = vmatmul.mubr.bf16.gmra.mxu0 %v1488
      %v1622 = vpop.f32.mrf.mxu0
      %v1623 = vadd.f32 %v1514, %v1622
      %v1624 = vpop.f32.mrf.mxu0
      %v1625 = vpop.f32.mrf.mxu0
      %v1626 = vadd.f32 %v1514, %v1625
      %v1627 = vpop.f32.mrf.mxu0
      %1628 = vmatprep.mubr.bf16.mxu0 0
      %1629 = vmatmul.mubr.bf16.gmra.mxu0 %v1489
      %v1630 = vpop.f32.mrf.mxu0
      %v1631 = vadd.f32 %v1514, %v1630
      %v1632 = vpop.f32.mrf.mxu0
      %v1633 = vpop.f32.mrf.mxu0
      %v1634 = vadd.f32 %v1514, %v1633
      %v1635 = vpop.f32.mrf.mxu0
      %1636 = vmatprep.mubr.bf16.mxu0 0
      %1637 = vmatmul.mubr.bf16.gmra.mxu0 %v1490
      %v1638 = vpop.f32.mrf.mxu0
      %v1639 = vadd.f32 %v1514, %v1638
      %v1640 = vpop.f32.mrf.mxu0
      %v1641 = vpop.f32.mrf.mxu0
      %v1642 = vadd.f32 %v1514, %v1641
      %v1643 = vpop.f32.mrf.mxu0
      %1644 = vmatprep.mubr.bf16.mxu0 0
      %1645 = vmatmul.mubr.bf16.gmra.mxu0 %v1491
      %v1646 = vpop.f32.mrf.mxu0
      %v1647 = vadd.f32 %v1514, %v1646
      %v1648 = vpop.f32.mrf.mxu0
      %v1649 = vpop.f32.mrf.mxu0
      %v1650 = vadd.f32 %v1514, %v1649
      %v1651 = vpop.f32.mrf.mxu0
      %1652 = vmatprep.mubr.bf16.mxu0 0
      %1653 = vmatmul.mubr.bf16.gmra.mxu0 %v1492
      %v1654 = vpop.f32.mrf.mxu0
      %v1655 = vadd.f32 %v1514, %v1654
      %v1656 = vpop.f32.mrf.mxu0
      %v1657 = vpop.f32.mrf.mxu0
      %v1658 = vadd.f32 %v1514, %v1657
      %v1659 = vpop.f32.mrf.mxu0
      %1660 = vdwg.mxu0
      %1661 = vst [vmem:[%s442] sm:$0xff] %v1599
      %1662 = vst [vmem:[%s442 + $0x8] sm:$0xff] %v1602
      %1663 = vst [vmem:[%s442 + $0x10] sm:$0xff] %v1607
      %1664 = vst [vmem:[%s442 + $0x18] sm:$0xff] %v1610
      %1665 = vst [vmem:[%s442 + $0x20] sm:$0xff] %v1615
      %1666 = vst [vmem:[%s442 + $0x28] sm:$0xff] %v1618
      %1667 = vst [vmem:[%s442 + $0x30] sm:$0xff] %v1623
      %1668 = vst [vmem:[%s442 + $0x38] sm:$0xff] %v1626
      %1669 = vst [vmem:[%s442 + $0x40] sm:$0xff] %v1631
      %1670 = vst [vmem:[%s442 + $0x48] sm:$0xff] %v1634
      %1671 = vst [vmem:[%s442 + $0x50] sm:$0xff] %v1639
      %1672 = vst [vmem:[%s442 + $0x58] sm:$0xff] %v1642
      %1673 = vst [vmem:[%s442 + $0x60] sm:$0xff] %v1647
      %1674 = vst [vmem:[%s442 + $0x68] sm:$0xff] %v1650
      %1675 = vst [vmem:[%s442 + $0x70] sm:$0xff] %v1655
      %1676 = vst [vmem:[%s442 + $0x78] sm:$0xff] %v1658
      %s1677 = smul.u32 16, %s24
      %p1678 = scmp.lt.s32.totalorder %s1677, 31
      %s1679 = scalar_select %p1678, %s1677, 31
      %s1680 = smul.addr %s1679, 8
      %s1681 = scalar_lea.vmem %s13, %s1680
      // Predicated region
      $region73: #{autoencoder_forward.1} parent=71 // pred_check
        %p1682 = pneg %p320
      $region74: #{autoencoder_forward.1} parent=71 // pred_check_branch
        %1684 = sbr.rel (%p1682) target = $region76
      $region75: #{autoencoder_forward.1} parent=71 // pred_region
        %s1685 = smul.u32 16, %s24
      $region76: #{autoencoder_forward.1} parent=71 // pred_fallthru
        _
    $region72: #{autoencoder_forward.1} parent=5 // pred_fallthru
      _
    %p1686 = scmp.le.s32.totalorder 2, %s19
    // Predicated region
    $region77: #{autoencoder_forward.1} parent=5 // pred_check
      %p1687 = pneg %p1686
    $region78: #{autoencoder_forward.1} parent=5 // pred_check_branch
      %1689 = sbr.rel (%p1687) target = $region80
    $region79: #{autoencoder_forward.1} parent=5 // pred_region
      %s1690 = ssub.s32 %s19, 2
      // Predicated region
      $region81: #{autoencoder_forward.1} parent=79 // pred_check
        %p1691 = pneg %p326
      $region82: #{autoencoder_forward.1} parent=79 // pred_check_branch
        %1693 = sbr.rel (%p1691) target = $region84
      $region83: #{autoencoder_forward.1} parent=79 // pred_region
        %s1694 = smul.u32 16, %s25
        %p1695 = scmp.lt.s32.totalorder %s1694, 31
        %s1696 = scalar_select %p1695, %s1694, 31
        %s1697 = smul.addr %s1696, 8
        %s1698 = scalar_lea.vmem %s13, %s1697
      $region84: #{autoencoder_forward.1} parent=79 // pred_fallthru
        _
    $region80: #{autoencoder_forward.1} parent=5 // pred_fallthru
      _
  $region6: #{autoencoder_forward.1} parent=0 // loop_footer
    %s23 = sadd.s32 1, %s19
  $region7: #{autoencoder_forward.1} parent=0 // loop_footer_branch
    %18 = sbr.rel target = $region3
  $region8: #{autoencoder_forward.1} parent=0 // loop_exit
    _

</llo_original>
